<compile_context>
chip_gen: v6e
topology: v6e:2x2x1
jax: 0.10.0
libtpu: 0.0.40
codegen_flags: <defaults>
</compile_context>

<pallas_src>
import functools
import math

import jax
import jax.numpy as jnp
from jax.experimental import pallas as pl
from jax.experimental.pallas import tpu as pltpu

EPS = 1e-5  # nn.LayerNorm default eps


def _layernorm(x, gamma, beta):
    # LayerNorm over the last dim (biased variance, like torch), f32.
    mean = jnp.mean(x, axis=-1, keepdims=True)
    var = jnp.mean((x - mean) ** 2, axis=-1, keepdims=True)
    return (x - mean) * jax.lax.rsqrt(var + EPS) * gamma + beta


def encoder_kernel(x_ref, g1_ref, b1_ref, wqkv_ref, bqkv_ref,
                   wproj_ref, bproj_ref, g2_ref, b2_ref,
                   w1_ref, bm1_ref, w2_ref, bm2_ref, o_ref,
                   *, num_heads):
    """One (TB, N, C) slab of batch elements per grid step."""
    TB, N, C = x_ref.shape
    D = C // num_heads
    R = TB * N
    scale = 1.0 / math.sqrt(D)

    x = x_ref[...].astype(jnp.float32).reshape(R, C)          # (R, C) rows, f32

    # ---------------- x + attn(norm1(x)) ----------------
    h = _layernorm(x, g1_ref[...], b1_ref[...])
    qkv = jnp.dot(h.astype(jnp.bfloat16), wqkv_ref[...],
                  preferred_element_type=jnp.float32) + bqkv_ref[...]    # (R, 3C)

    # fold 1/sqrt(D) into q once (covers every head) instead of scaling scores
    q = (qkv[:, 0:C] * scale).reshape(TB, N, C).astype(jnp.bfloat16)
    k = qkv[:, C:2 * C].reshape(TB, N, C).astype(jnp.bfloat16)
    v = qkv[:, 2 * C:3 * C].reshape(TB, N, C).astype(jnp.bfloat16)

    # Per-head attention, batched over TB via 3-D einsums.  The output
    # projection is accumulated head-by-head (concat_h(oh) @ Wp == sum_h oh @ Wp[h])
    # so no concatenate / head relayout is needed.
    # TODO(synk): for long sequences (N >= ~512) replace the materialized (N, N)
    # scores with a flash-style online-softmax loop over kv tiles.
    proj = jnp.zeros((R, C), jnp.float32)
    for hd in range(num_heads):                    # static Python loop, small H
        lo = hd * D
        qh = q[:, :, lo:lo + D]                    # (TB, N, D)
        kh = k[:, :, lo:lo + D]
        vh = v[:, :, lo:lo + D]
        s = jnp.einsum('bnd,bmd->bnm', qh, kh,
                       preferred_element_type=jnp.float32)     # (TB, N, N) f32
        s = s - jnp.max(s, axis=-1, keepdims=True)
        p = jnp.exp(s)
        p = p * pl.reciprocal(jnp.sum(p, axis=-1, keepdims=True), approx=True)
        oh = jnp.einsum('bnm,bmd->bnd', p.astype(jnp.bfloat16), vh,
                        preferred_element_type=jnp.float32)    # (TB, N, D)
        proj = proj + jnp.dot(oh.reshape(R, D).astype(jnp.bfloat16),
                              wproj_ref[hd],                   # (D, C) slab
                              preferred_element_type=jnp.float32)
    x = x + proj + bproj_ref[...]

    # ---------------- x + mlp(norm2(x)) ----------------
    h2 = _layernorm(x, g2_ref[...], b2_ref[...])
    m = jnp.dot(h2.astype(jnp.bfloat16), w1_ref[...],
                preferred_element_type=jnp.float32) + bm1_ref[...]       # (R, mlp)
    m = 0.5 * m * (1.0 + jax.lax.erf(m * (2.0 ** -0.5)))                 # exact GELU
    # nn.Dropout(0.1) is identity in eval/inference mode.
    m = jnp.dot(m.astype(jnp.bfloat16), w2_ref[...],
                preferred_element_type=jnp.float32) + bm2_ref[...]       # (R, C)
    x = x + m

    o_ref[...] = x.reshape(TB, N, C).astype(o_ref.dtype)


def _pick_tb(B, N, target_rows=256):
    """Largest divisor of B with TB*N <= target_rows (so the MXU sees >=~256 rows
    when possible without blowing the VMEM budget on v7x)."""
    tb = 1
    for t in range(1, B + 1):
        if B % t == 0 and t * N <= max(target_rows, N):
            tb = t
    return tb


def transformer_encoder(x, params, num_heads):
    B, N, C = x.shape
    D = C // num_heads
    mlp_dim = params["w1"].shape[1]
    TB = _pick_tb(B, N)
    kern = functools.partial(encoder_kernel, num_heads=num_heads)

    # bf16 copies of the matmul weights (MXU operands); biases and LayerNorm
    # params stay f32.  wproj is reshaped to (H, D, C) so the kernel takes
    # per-head slabs along the leading (untiled) axis.
    wqkv = params["wqkv"].astype(jnp.bfloat16)
    wproj = params["wproj"].astype(jnp.bfloat16).reshape(num_heads, D, C)
    w1 = params["w1"].astype(jnp.bfloat16)
    w2 = params["w2"].astype(jnp.bfloat16)

    def full(shape):
        # whole (small) parameter array resident in VMEM, same block every step
        nd = len(shape)
        return pl.BlockSpec(shape, lambda b, _nd=nd: (0,) * _nd)

    in_specs = [
        pl.BlockSpec((TB, N, C), lambda b: (b, 0, 0)),     # x slab
        full((1, C)), full((1, C)),                        # norm1 gamma/beta
        full((C, 3 * C)), full((1, 3 * C)),                # qkv W/b
        full((num_heads, D, C)), full((1, C)),             # proj W (per head)/b
        full((1, C)), full((1, C)),                        # norm2 gamma/beta
        full((C, mlp_dim)), full((1, mlp_dim)),            # mlp fc1 W/b
        full((mlp_dim, C)), full((1, C)),                  # mlp fc2 W/b
    ]

    # advisory cost hint for XLA's scheduler around the custom call
    flops = int(2 * B * N * C * (4 * C + 2 * mlp_dim) + 4 * B * N * N * C)
    transcendentals = int(B * N * (num_heads * N + mlp_dim))
    bytes_accessed = int(
        2 * B * N * C * 4                                    # x in + out (f32)
        + (wqkv.size + wproj.size + w1.size + w2.size) * 2   # bf16 weights
        + (3 * C + C + mlp_dim + C + 4 * C) * 4)             # f32 biases + LN params

    return pl.pallas_call(
        kern,
        out_shape=jax.ShapeDtypeStruct((B, N, C), x.dtype),
        grid=(B // TB,),
        in_specs=in_specs,
        out_specs=pl.BlockSpec((TB, N, C), lambda b: (b, 0, 0)),
        compiler_params=pltpu.CompilerParams(
            # batch slabs are independent -> shard across the 2 TCs on v7x
            dimension_semantics=("parallel",),
            vmem_limit_bytes=48 * 1024 * 1024,
        ),
        cost_estimate=pl.CostEstimate(
            flops=flops, transcendentals=transcendentals,
            bytes_accessed=bytes_accessed),
    )(x, params["g1"], params["b1"], wqkv, params["bqkv"],
      wproj, params["bproj"], params["g2"], params["b2"],
      w1, params["bm1"], w2, params["bm2"])


# ---------------- pure-JAX f32 reference (for validation) ----------------
def reference(x, p, num_heads):
    B, N, C = x.shape
    D = C // num_heads

    def ln(x, g, b):
        mu = x.mean(-1, keepdims=True)
        var = ((x - mu) ** 2).mean(-1, keepdims=True)
        return (x - mu) / jnp.sqrt(var + EPS) * g + b

    h = ln(x, p["g1"], p["b1"])
    qkv = h @ p["wqkv"] + p["bqkv"]                         # (B,N,3C)
    qkv = qkv.reshape(B, N, 3, num_heads, D).transpose(2, 0, 3, 1, 4)
    q, k, v = qkv[0], qkv[1], qkv[2]                        # (B,H,N,D)
    s = jnp.einsum("bhnd,bhmd->bhnm", q, k) / (D ** 0.5)
    a = jax.nn.softmax(s, axis=-1)
    o = jnp.einsum("bhnm,bhmd->bhnd", a, v).transpose(0, 2, 1, 3).reshape(B, N, C)
    x = x + (o @ p["wproj"] + p["bproj"])
    h2 = ln(x, p["g2"], p["b2"])
    m = h2 @ p["w1"] + p["bm1"]
    m = 0.5 * m * (1.0 + jax.lax.erf(m / jnp.sqrt(2.0)))
    m = m @ p["w2"] + p["bm2"]
    return x + m


if __name__ == "__main__":
    B, N, C = 2, 8, 32
    num_heads, mlp_dim = 4, 64

    key = jax.random.PRNGKey(0)
    ks = jax.random.split(key, 10)
    params = {
        "g1": jnp.ones((1, C), jnp.float32),
        "b1": jnp.zeros((1, C), jnp.float32),
        "wqkv": 0.05 * jax.random.normal(ks[0], (C, 3 * C), jnp.float32),
        "bqkv": 0.02 * jax.random.normal(ks[1], (1, 3 * C), jnp.float32),
        "wproj": 0.05 * jax.random.normal(ks[2], (C, C), jnp.float32),
        "bproj": 0.02 * jax.random.normal(ks[3], (1, C), jnp.float32),
        "g2": jnp.ones((1, C), jnp.float32),
        "b2": jnp.zeros((1, C), jnp.float32),
        "w1": 0.05 * jax.random.normal(ks[4], (C, mlp_dim), jnp.float32),
        "bm1": 0.02 * jax.random.normal(ks[5], (1, mlp_dim), jnp.float32),
        "w2": 0.05 * jax.random.normal(ks[6], (mlp_dim, C), jnp.float32),
        "bm2": 0.02 * jax.random.normal(ks[7], (1, C), jnp.float32),
    }
    x = jax.random.normal(ks[8], (B, N, C), jnp.float32)

    out = transformer_encoder(x, params, num_heads)
    out = jax.block_until_ready(out)

    ref = reference(x, params, num_heads)
    assert out.shape == (B, N, C)
    # tolerance loosened slightly vs. f32 reference because matmul operands
    # (and weights) are bf16; accumulation stays f32.
    assert jnp.allclose(out, ref, atol=2e-2, rtol=2e-2), "mismatch vs reference"
    print("KERNEL_OK")
</pallas_src>

<mosaic_0001>
module attributes {stable_mosaic.version = 11 : i64} {
  func.func @encoder_kernel(%arg0: i32, %arg1: memref<2x8x32xf32, #tpu.memory_space<vmem>>, %arg2: memref<1x32xf32, #tpu.memory_space<vmem>>, %arg3: memref<1x32xf32, #tpu.memory_space<vmem>>, %arg4: memref<32x96xbf16, #tpu.memory_space<vmem>>, %arg5: memref<1x96xf32, #tpu.memory_space<vmem>>, %arg6: memref<4x8x32xbf16, #tpu.memory_space<vmem>>, %arg7: memref<1x32xf32, #tpu.memory_space<vmem>>, %arg8: memref<1x32xf32, #tpu.memory_space<vmem>>, %arg9: memref<1x32xf32, #tpu.memory_space<vmem>>, %arg10: memref<32x64xbf16, #tpu.memory_space<vmem>>, %arg11: memref<1x64xf32, #tpu.memory_space<vmem>>, %arg12: memref<64x32xbf16, #tpu.memory_space<vmem>>, %arg13: memref<1x32xf32, #tpu.memory_space<vmem>>, %arg14: memref<2x8x32xf32, #tpu.memory_space<vmem>>) attributes {dimension_semantics = [#tpu.dimension_semantics<parallel>], iteration_bounds = array<i64: 1>, scalar_prefetch = 0 : i64, scratch_operands = 0 : i64, tpu.core_type = #tpu.core_type<tc>, window_params = [{transform_indices = @transform_0, window_bounds = array<i64: 2, 8, 32>}, {pipeline_mode = #tpu.pipeline_mode<synchronous>, transform_indices = @transform_1, window_bounds = array<i64: 1, 32>}, {pipeline_mode = #tpu.pipeline_mode<synchronous>, transform_indices = @transform_2, window_bounds = array<i64: 1, 32>}, {pipeline_mode = #tpu.pipeline_mode<synchronous>, transform_indices = @transform_3, window_bounds = array<i64: 32, 96>}, {pipeline_mode = #tpu.pipeline_mode<synchronous>, transform_indices = @transform_4, window_bounds = array<i64: 1, 96>}, {pipeline_mode = #tpu.pipeline_mode<synchronous>, transform_indices = @transform_5, window_bounds = array<i64: 4, 8, 32>}, {pipeline_mode = #tpu.pipeline_mode<synchronous>, transform_indices = @transform_6, window_bounds = array<i64: 1, 32>}, {pipeline_mode = #tpu.pipeline_mode<synchronous>, transform_indices = @transform_7, window_bounds = array<i64: 1, 32>}, {pipeline_mode = #tpu.pipeline_mode<synchronous>, transform_indices = @transform_8, window_bounds = array<i64: 1, 32>}, {pipeline_mode = #tpu.pipeline_mode<synchronous>, transform_indices = @transform_9, window_bounds = array<i64: 32, 64>}, {pipeline_mode = #tpu.pipeline_mode<synchronous>, transform_indices = @transform_10, window_bounds = array<i64: 1, 64>}, {pipeline_mode = #tpu.pipeline_mode<synchronous>, transform_indices = @transform_11, window_bounds = array<i64: 64, 32>}, {pipeline_mode = #tpu.pipeline_mode<synchronous>, transform_indices = @transform_12, window_bounds = array<i64: 1, 32>}, {transform_indices = @transform_13, window_bounds = array<i64: 2, 8, 32>}]} {
    %c0 = arith.constant 0 : index
    %c0_0 = arith.constant 0 : index
    %c0_1 = arith.constant 0 : index
    %0 = vector.load %arg1[%c0, %c0_0, %c0_1] : memref<2x8x32xf32, #tpu.memory_space<vmem>>, vector<2x8x32xf32>
    %1 = vector.shape_cast %0 : vector<2x8x32xf32> to vector<16x32xf32>
    %c0_2 = arith.constant 0 : index
    %c0_3 = arith.constant 0 : index
    %2 = vector.load %arg2[%c0_2, %c0_3] : memref<1x32xf32, #tpu.memory_space<vmem>>, vector<1x32xf32>
    %c0_4 = arith.constant 0 : index
    %c0_5 = arith.constant 0 : index
    %3 = vector.load %arg3[%c0_4, %c0_5] : memref<1x32xf32, #tpu.memory_space<vmem>>, vector<1x32xf32>
    %cst = arith.constant dense<0.000000e+00> : vector<16xf32>
    %4 = vector.multi_reduction <add>, %1, %cst [1] : vector<16x32xf32> to vector<16xf32>
    %5 = vector.shape_cast %4 : vector<16xf32> to vector<16x1xf32>
    %cst_6 = arith.constant 3.200000e+01 : f32
    %6 = vector.broadcast %cst_6 : f32 to vector<16x1xf32>
    %7 = arith.divf %5, %6 : vector<16x1xf32>
    %8 = vector.broadcast %7 : vector<16x1xf32> to vector<16x32xf32>
    %9 = arith.subf %1, %8 : vector<16x32xf32>
    %10 = arith.mulf %9, %9 : vector<16x32xf32>
    %cst_7 = arith.constant dense<0.000000e+00> : vector<16xf32>
    %11 = vector.multi_reduction <add>, %10, %cst_7 [1] : vector<16x32xf32> to vector<16xf32>
    %12 = vector.shape_cast %11 : vector<16xf32> to vector<16x1xf32>
    %cst_8 = arith.constant 3.200000e+01 : f32
    %13 = vector.broadcast %cst_8 : f32 to vector<16x1xf32>
    %14 = arith.divf %12, %13 : vector<16x1xf32>
    %15 = vector.broadcast %7 : vector<16x1xf32> to vector<16x32xf32>
    %16 = arith.subf %1, %15 : vector<16x32xf32>
    %cst_9 = arith.constant 9.99999974E-6 : f32
    %17 = vector.broadcast %cst_9 : f32 to vector<16x1xf32>
    %18 = arith.addf %14, %17 : vector<16x1xf32>
    %19 = math.rsqrt %18 : vector<16x1xf32>
    %20 = vector.broadcast %19 : vector<16x1xf32> to vector<16x32xf32>
    %21 = arith.mulf %16, %20 : vector<16x32xf32>
    %22 = vector.broadcast %2 : vector<1x32xf32> to vector<16x32xf32>
    %23 = arith.mulf %21, %22 : vector<16x32xf32>
    %24 = vector.broadcast %3 : vector<1x32xf32> to vector<16x32xf32>
    %25 = arith.addf %23, %24 : vector<16x32xf32>
    %26 = arith.truncf %25 : vector<16x32xf32> to vector<16x32xbf16>
    %c0_10 = arith.constant 0 : index
    %c0_11 = arith.constant 0 : index
    %27 = vector.load %arg4[%c0_10, %c0_11] : memref<32x96xbf16, #tpu.memory_space<vmem>>, vector<32x96xbf16>
    %cst_12 = arith.constant dense<0.000000e+00> : vector<16x96xf32>
    %28 = tpu.matmul %26, %27, %cst_12 {dimension_numbers = #tpu.dot_dimension_numbers<[1], [0], [0], [1], [0, 0, 1, 1], [], []>} : vector<16x32xbf16>, vector<32x96xbf16>, vector<16x96xf32> -> vector<16x96xf32>
    %c0_13 = arith.constant 0 : index
    %c0_14 = arith.constant 0 : index
    %29 = vector.load %arg5[%c0_13, %c0_14] : memref<1x96xf32, #tpu.memory_space<vmem>>, vector<1x96xf32>
    %30 = vector.broadcast %29 : vector<1x96xf32> to vector<16x96xf32>
    %31 = arith.addf %28, %30 : vector<16x96xf32>
    %32 = vector.extract_strided_slice %31 {offsets = [0, 0], sizes = [16, 32], strides = [1, 1]} : vector<16x96xf32> to vector<16x32xf32>
    %cst_15 = arith.constant 0.353553385 : f32
    %33 = vector.broadcast %cst_15 : f32 to vector<16x32xf32>
    %34 = arith.mulf %32, %33 : vector<16x32xf32>
    %35 = vector.shape_cast %34 : vector<16x32xf32> to vector<2x8x32xf32>
    %36 = arith.truncf %35 : vector<2x8x32xf32> to vector<2x8x32xbf16>
    %37 = vector.extract_strided_slice %31 {offsets = [0, 32], sizes = [16, 32], strides = [1, 1]} : vector<16x96xf32> to vector<16x32xf32>
    %38 = vector.shape_cast %37 : vector<16x32xf32> to vector<2x8x32xf32>
    %39 = arith.truncf %38 : vector<2x8x32xf32> to vector<2x8x32xbf16>
    %40 = vector.extract_strided_slice %31 {offsets = [0, 64], sizes = [16, 32], strides = [1, 1]} : vector<16x96xf32> to vector<16x32xf32>
    %41 = vector.shape_cast %40 : vector<16x32xf32> to vector<2x8x32xf32>
    %42 = arith.truncf %41 : vector<2x8x32xf32> to vector<2x8x32xbf16>
    %cst_16 = arith.constant 0.000000e+00 : f32
    %43 = vector.broadcast %cst_16 : f32 to vector<16x32xf32>
    %44 = vector.extract_strided_slice %36 {offsets = [0, 0, 0], sizes = [2, 8, 8], strides = [1, 1, 1]} : vector<2x8x32xbf16> to vector<2x8x8xbf16>
    %45 = vector.extract_strided_slice %39 {offsets = [0, 0, 0], sizes = [2, 8, 8], strides = [1, 1, 1]} : vector<2x8x32xbf16> to vector<2x8x8xbf16>
    %46 = vector.extract_strided_slice %42 {offsets = [0, 0, 0], sizes = [2, 8, 8], strides = [1, 1, 1]} : vector<2x8x32xbf16> to vector<2x8x8xbf16>
    "tpu.trace_start"() <{level = 10 : i32, message = "bnd,bmd->bnm"}> : () -> ()
    %cst_17 = arith.constant dense<0.000000e+00> : vector<2x8x8xf32>
    %47 = tpu.matmul %44, %45, %cst_17 {dimension_numbers = #tpu.dot_dimension_numbers<[2], [2], [1], [1], [0, 0, 0, 1, 1, 1], [0], [0]>} : vector<2x8x8xbf16>, vector<2x8x8xbf16>, vector<2x8x8xf32> -> vector<2x8x8xf32>
    "tpu.trace_stop"() : () -> ()
    %cst_18 = arith.constant dense<0xFF800000> : vector<2x8xf32>
    %48 = vector.multi_reduction <maximumf>, %47, %cst_18 [2] : vector<2x8x8xf32> to vector<2x8xf32>
    %49 = vector.shape_cast %48 : vector<2x8xf32> to vector<2x8x1xf32>
    %50 = vector.broadcast %49 : vector<2x8x1xf32> to vector<2x8x8xf32>
    %51 = arith.subf %47, %50 : vector<2x8x8xf32>
    %52 = math.exp %51 : vector<2x8x8xf32>
    %cst_19 = arith.constant dense<0.000000e+00> : vector<2x8xf32>
    %53 = vector.multi_reduction <add>, %52, %cst_19 [2] : vector<2x8x8xf32> to vector<2x8xf32>
    %54 = vector.shape_cast %53 : vector<2x8xf32> to vector<2x8x1xf32>
    %55 = tpu.reciprocal %54 {approx = true} : vector<2x8x1xf32> -> vector<2x8x1xf32>
    %56 = vector.broadcast %55 : vector<2x8x1xf32> to vector<2x8x8xf32>
    %57 = arith.mulf %52, %56 : vector<2x8x8xf32>
    %58 = arith.truncf %57 : vector<2x8x8xf32> to vector<2x8x8xbf16>
    "tpu.trace_start"() <{level = 10 : i32, message = "bnm,bmd->bnd"}> : () -> ()
    %cst_20 = arith.constant dense<0.000000e+00> : vector<2x8x8xf32>
    %59 = tpu.matmul %58, %46, %cst_20 {dimension_numbers = #tpu.dot_dimension_numbers<[2], [1], [1], [2], [0, 0, 0, 1, 1, 2], [0], [0]>} : vector<2x8x8xbf16>, vector<2x8x8xbf16>, vector<2x8x8xf32> -> vector<2x8x8xf32>
    "tpu.trace_stop"() : () -> ()
    %60 = vector.shape_cast %59 : vector<2x8x8xf32> to vector<16x8xf32>
    %61 = arith.truncf %60 : vector<16x8xf32> to vector<16x8xbf16>
    %c0_21 = arith.constant 0 : index
    %c0_22 = arith.constant 0 : index
    %c0_23 = arith.constant 0 : index
    %62 = vector.load %arg6[%c0_21, %c0_22, %c0_23] : memref<4x8x32xbf16, #tpu.memory_space<vmem>>, vector<1x8x32xbf16>
    %63 = vector.shape_cast %62 : vector<1x8x32xbf16> to vector<8x32xbf16>
    %cst_24 = arith.constant dense<0.000000e+00> : vector<16x32xf32>
    %64 = tpu.matmul %61, %63, %cst_24 {dimension_numbers = #tpu.dot_dimension_numbers<[1], [0], [0], [1], [0, 0, 1, 1], [], []>} : vector<16x8xbf16>, vector<8x32xbf16>, vector<16x32xf32> -> vector<16x32xf32>
    %65 = arith.addf %43, %64 : vector<16x32xf32>
    %66 = vector.extract_strided_slice %36 {offsets = [0, 0, 8], sizes = [2, 8, 8], strides = [1, 1, 1]} : vector<2x8x32xbf16> to vector<2x8x8xbf16>
    %67 = vector.extract_strided_slice %39 {offsets = [0, 0, 8], sizes = [2, 8, 8], strides = [1, 1, 1]} : vector<2x8x32xbf16> to vector<2x8x8xbf16>
    %68 = vector.extract_strided_slice %42 {offsets = [0, 0, 8], sizes = [2, 8, 8], strides = [1, 1, 1]} : vector<2x8x32xbf16> to vector<2x8x8xbf16>
    "tpu.trace_start"() <{level = 10 : i32, message = "bnd,bmd->bnm"}> : () -> ()
    %cst_25 = arith.constant dense<0.000000e+00> : vector<2x8x8xf32>
    %69 = tpu.matmul %66, %67, %cst_25 {dimension_numbers = #tpu.dot_dimension_numbers<[2], [2], [1], [1], [0, 0, 0, 1, 1, 1], [0], [0]>} : vector<2x8x8xbf16>, vector<2x8x8xbf16>, vector<2x8x8xf32> -> vector<2x8x8xf32>
    "tpu.trace_stop"() : () -> ()
    %cst_26 = arith.constant dense<0xFF800000> : vector<2x8xf32>
    %70 = vector.multi_reduction <maximumf>, %69, %cst_26 [2] : vector<2x8x8xf32> to vector<2x8xf32>
    %71 = vector.shape_cast %70 : vector<2x8xf32> to vector<2x8x1xf32>
    %72 = vector.broadcast %71 : vector<2x8x1xf32> to vector<2x8x8xf32>
    %73 = arith.subf %69, %72 : vector<2x8x8xf32>
    %74 = math.exp %73 : vector<2x8x8xf32>
    %cst_27 = arith.constant dense<0.000000e+00> : vector<2x8xf32>
    %75 = vector.multi_reduction <add>, %74, %cst_27 [2] : vector<2x8x8xf32> to vector<2x8xf32>
    %76 = vector.shape_cast %75 : vector<2x8xf32> to vector<2x8x1xf32>
    %77 = tpu.reciprocal %76 {approx = true} : vector<2x8x1xf32> -> vector<2x8x1xf32>
    %78 = vector.broadcast %77 : vector<2x8x1xf32> to vector<2x8x8xf32>
    %79 = arith.mulf %74, %78 : vector<2x8x8xf32>
    %80 = arith.truncf %79 : vector<2x8x8xf32> to vector<2x8x8xbf16>
    "tpu.trace_start"() <{level = 10 : i32, message = "bnm,bmd->bnd"}> : () -> ()
    %cst_28 = arith.constant dense<0.000000e+00> : vector<2x8x8xf32>
    %81 = tpu.matmul %80, %68, %cst_28 {dimension_numbers = #tpu.dot_dimension_numbers<[2], [1], [1], [2], [0, 0, 0, 1, 1, 2], [0], [0]>} : vector<2x8x8xbf16>, vector<2x8x8xbf16>, vector<2x8x8xf32> -> vector<2x8x8xf32>
    "tpu.trace_stop"() : () -> ()
    %82 = vector.shape_cast %81 : vector<2x8x8xf32> to vector<16x8xf32>
    %83 = arith.truncf %82 : vector<16x8xf32> to vector<16x8xbf16>
    %c1 = arith.constant 1 : index
    %c0_29 = arith.constant 0 : index
    %c0_30 = arith.constant 0 : index
    %84 = vector.load %arg6[%c1, %c0_29, %c0_30] : memref<4x8x32xbf16, #tpu.memory_space<vmem>>, vector<1x8x32xbf16>
    %85 = vector.shape_cast %84 : vector<1x8x32xbf16> to vector<8x32xbf16>
    %cst_31 = arith.constant dense<0.000000e+00> : vector<16x32xf32>
    %86 = tpu.matmul %83, %85, %cst_31 {dimension_numbers = #tpu.dot_dimension_numbers<[1], [0], [0], [1], [0, 0, 1, 1], [], []>} : vector<16x8xbf16>, vector<8x32xbf16>, vector<16x32xf32> -> vector<16x32xf32>
    %87 = arith.addf %65, %86 : vector<16x32xf32>
    %88 = vector.extract_strided_slice %36 {offsets = [0, 0, 16], sizes = [2, 8, 8], strides = [1, 1, 1]} : vector<2x8x32xbf16> to vector<2x8x8xbf16>
    %89 = vector.extract_strided_slice %39 {offsets = [0, 0, 16], sizes = [2, 8, 8], strides = [1, 1, 1]} : vector<2x8x32xbf16> to vector<2x8x8xbf16>
    %90 = vector.extract_strided_slice %42 {offsets = [0, 0, 16], sizes = [2, 8, 8], strides = [1, 1, 1]} : vector<2x8x32xbf16> to vector<2x8x8xbf16>
    "tpu.trace_start"() <{level = 10 : i32, message = "bnd,bmd->bnm"}> : () -> ()
    %cst_32 = arith.constant dense<0.000000e+00> : vector<2x8x8xf32>
    %91 = tpu.matmul %88, %89, %cst_32 {dimension_numbers = #tpu.dot_dimension_numbers<[2], [2], [1], [1], [0, 0, 0, 1, 1, 1], [0], [0]>} : vector<2x8x8xbf16>, vector<2x8x8xbf16>, vector<2x8x8xf32> -> vector<2x8x8xf32>
    "tpu.trace_stop"() : () -> ()
    %cst_33 = arith.constant dense<0xFF800000> : vector<2x8xf32>
    %92 = vector.multi_reduction <maximumf>, %91, %cst_33 [2] : vector<2x8x8xf32> to vector<2x8xf32>
    %93 = vector.shape_cast %92 : vector<2x8xf32> to vector<2x8x1xf32>
    %94 = vector.broadcast %93 : vector<2x8x1xf32> to vector<2x8x8xf32>
    %95 = arith.subf %91, %94 : vector<2x8x8xf32>
    %96 = math.exp %95 : vector<2x8x8xf32>
    %cst_34 = arith.constant dense<0.000000e+00> : vector<2x8xf32>
    %97 = vector.multi_reduction <add>, %96, %cst_34 [2] : vector<2x8x8xf32> to vector<2x8xf32>
    %98 = vector.shape_cast %97 : vector<2x8xf32> to vector<2x8x1xf32>
    %99 = tpu.reciprocal %98 {approx = true} : vector<2x8x1xf32> -> vector<2x8x1xf32>
    %100 = vector.broadcast %99 : vector<2x8x1xf32> to vector<2x8x8xf32>
    %101 = arith.mulf %96, %100 : vector<2x8x8xf32>
    %102 = arith.truncf %101 : vector<2x8x8xf32> to vector<2x8x8xbf16>
    "tpu.trace_start"() <{level = 10 : i32, message = "bnm,bmd->bnd"}> : () -> ()
    %cst_35 = arith.constant dense<0.000000e+00> : vector<2x8x8xf32>
    %103 = tpu.matmul %102, %90, %cst_35 {dimension_numbers = #tpu.dot_dimension_numbers<[2], [1], [1], [2], [0, 0, 0, 1, 1, 2], [0], [0]>} : vector<2x8x8xbf16>, vector<2x8x8xbf16>, vector<2x8x8xf32> -> vector<2x8x8xf32>
    "tpu.trace_stop"() : () -> ()
    %104 = vector.shape_cast %103 : vector<2x8x8xf32> to vector<16x8xf32>
    %105 = arith.truncf %104 : vector<16x8xf32> to vector<16x8xbf16>
    %c2 = arith.constant 2 : index
    %c0_36 = arith.constant 0 : index
    %c0_37 = arith.constant 0 : index
    %106 = vector.load %arg6[%c2, %c0_36, %c0_37] : memref<4x8x32xbf16, #tpu.memory_space<vmem>>, vector<1x8x32xbf16>
    %107 = vector.shape_cast %106 : vector<1x8x32xbf16> to vector<8x32xbf16>
    %cst_38 = arith.constant dense<0.000000e+00> : vector<16x32xf32>
    %108 = tpu.matmul %105, %107, %cst_38 {dimension_numbers = #tpu.dot_dimension_numbers<[1], [0], [0], [1], [0, 0, 1, 1], [], []>} : vector<16x8xbf16>, vector<8x32xbf16>, vector<16x32xf32> -> vector<16x32xf32>
    %109 = arith.addf %87, %108 : vector<16x32xf32>
    %110 = vector.extract_strided_slice %36 {offsets = [0, 0, 24], sizes = [2, 8, 8], strides = [1, 1, 1]} : vector<2x8x32xbf16> to vector<2x8x8xbf16>
    %111 = vector.extract_strided_slice %39 {offsets = [0, 0, 24], sizes = [2, 8, 8], strides = [1, 1, 1]} : vector<2x8x32xbf16> to vector<2x8x8xbf16>
    %112 = vector.extract_strided_slice %42 {offsets = [0, 0, 24], sizes = [2, 8, 8], strides = [1, 1, 1]} : vector<2x8x32xbf16> to vector<2x8x8xbf16>
    "tpu.trace_start"() <{level = 10 : i32, message = "bnd,bmd->bnm"}> : () -> ()
    %cst_39 = arith.constant dense<0.000000e+00> : vector<2x8x8xf32>
    %113 = tpu.matmul %110, %111, %cst_39 {dimension_numbers = #tpu.dot_dimension_numbers<[2], [2], [1], [1], [0, 0, 0, 1, 1, 1], [0], [0]>} : vector<2x8x8xbf16>, vector<2x8x8xbf16>, vector<2x8x8xf32> -> vector<2x8x8xf32>
    "tpu.trace_stop"() : () -> ()
    %cst_40 = arith.constant dense<0xFF800000> : vector<2x8xf32>
    %114 = vector.multi_reduction <maximumf>, %113, %cst_40 [2] : vector<2x8x8xf32> to vector<2x8xf32>
    %115 = vector.shape_cast %114 : vector<2x8xf32> to vector<2x8x1xf32>
    %116 = vector.broadcast %115 : vector<2x8x1xf32> to vector<2x8x8xf32>
    %117 = arith.subf %113, %116 : vector<2x8x8xf32>
    %118 = math.exp %117 : vector<2x8x8xf32>
    %cst_41 = arith.constant dense<0.000000e+00> : vector<2x8xf32>
    %119 = vector.multi_reduction <add>, %118, %cst_41 [2] : vector<2x8x8xf32> to vector<2x8xf32>
    %120 = vector.shape_cast %119 : vector<2x8xf32> to vector<2x8x1xf32>
    %121 = tpu.reciprocal %120 {approx = true} : vector<2x8x1xf32> -> vector<2x8x1xf32>
    %122 = vector.broadcast %121 : vector<2x8x1xf32> to vector<2x8x8xf32>
    %123 = arith.mulf %118, %122 : vector<2x8x8xf32>
    %124 = arith.truncf %123 : vector<2x8x8xf32> to vector<2x8x8xbf16>
    "tpu.trace_start"() <{level = 10 : i32, message = "bnm,bmd->bnd"}> : () -> ()
    %cst_42 = arith.constant dense<0.000000e+00> : vector<2x8x8xf32>
    %125 = tpu.matmul %124, %112, %cst_42 {dimension_numbers = #tpu.dot_dimension_numbers<[2], [1], [1], [2], [0, 0, 0, 1, 1, 2], [0], [0]>} : vector<2x8x8xbf16>, vector<2x8x8xbf16>, vector<2x8x8xf32> -> vector<2x8x8xf32>
    "tpu.trace_stop"() : () -> ()
    %126 = vector.shape_cast %125 : vector<2x8x8xf32> to vector<16x8xf32>
    %127 = arith.truncf %126 : vector<16x8xf32> to vector<16x8xbf16>
    %c3 = arith.constant 3 : index
    %c0_43 = arith.constant 0 : index
    %c0_44 = arith.constant 0 : index
    %128 = vector.load %arg6[%c3, %c0_43, %c0_44] : memref<4x8x32xbf16, #tpu.memory_space<vmem>>, vector<1x8x32xbf16>
    %129 = vector.shape_cast %128 : vector<1x8x32xbf16> to vector<8x32xbf16>
    %cst_45 = arith.constant dense<0.000000e+00> : vector<16x32xf32>
    %130 = tpu.matmul %127, %129, %cst_45 {dimension_numbers = #tpu.dot_dimension_numbers<[1], [0], [0], [1], [0, 0, 1, 1], [], []>} : vector<16x8xbf16>, vector<8x32xbf16>, vector<16x32xf32> -> vector<16x32xf32>
    %131 = arith.addf %109, %130 : vector<16x32xf32>
    %132 = arith.addf %1, %131 : vector<16x32xf32>
    %c0_46 = arith.constant 0 : index
    %c0_47 = arith.constant 0 : index
    %133 = vector.load %arg7[%c0_46, %c0_47] : memref<1x32xf32, #tpu.memory_space<vmem>>, vector<1x32xf32>
    %134 = vector.broadcast %133 : vector<1x32xf32> to vector<16x32xf32>
    %135 = arith.addf %132, %134 : vector<16x32xf32>
    %c0_48 = arith.constant 0 : index
    %c0_49 = arith.constant 0 : index
    %136 = vector.load %arg8[%c0_48, %c0_49] : memref<1x32xf32, #tpu.memory_space<vmem>>, vector<1x32xf32>
    %c0_50 = arith.constant 0 : index
    %c0_51 = arith.constant 0 : index
    %137 = vector.load %arg9[%c0_50, %c0_51] : memref<1x32xf32, #tpu.memory_space<vmem>>, vector<1x32xf32>
    %cst_52 = arith.constant dense<0.000000e+00> : vector<16xf32>
    %138 = vector.multi_reduction <add>, %135, %cst_52 [1] : vector<16x32xf32> to vector<16xf32>
    %139 = vector.shape_cast %138 : vector<16xf32> to vector<16x1xf32>
    %cst_53 = arith.constant 3.200000e+01 : f32
    %140 = vector.broadcast %cst_53 : f32 to vector<16x1xf32>
    %141 = arith.divf %139, %140 : vector<16x1xf32>
    %142 = vector.broadcast %141 : vector<16x1xf32> to vector<16x32xf32>
    %143 = arith.subf %135, %142 : vector<16x32xf32>
    %144 = arith.mulf %143, %143 : vector<16x32xf32>
    %cst_54 = arith.constant dense<0.000000e+00> : vector<16xf32>
    %145 = vector.multi_reduction <add>, %144, %cst_54 [1] : vector<16x32xf32> to vector<16xf32>
    %146 = vector.shape_cast %145 : vector<16xf32> to vector<16x1xf32>
    %cst_55 = arith.constant 3.200000e+01 : f32
    %147 = vector.broadcast %cst_55 : f32 to vector<16x1xf32>
    %148 = arith.divf %146, %147 : vector<16x1xf32>
    %149 = vector.broadcast %141 : vector<16x1xf32> to vector<16x32xf32>
    %150 = arith.subf %135, %149 : vector<16x32xf32>
    %cst_56 = arith.constant 9.99999974E-6 : f32
    %151 = vector.broadcast %cst_56 : f32 to vector<16x1xf32>
    %152 = arith.addf %148, %151 : vector<16x1xf32>
    %153 = math.rsqrt %152 : vector<16x1xf32>
    %154 = vector.broadcast %153 : vector<16x1xf32> to vector<16x32xf32>
    %155 = arith.mulf %150, %154 : vector<16x32xf32>
    %156 = vector.broadcast %136 : vector<1x32xf32> to vector<16x32xf32>
    %157 = arith.mulf %155, %156 : vector<16x32xf32>
    %158 = vector.broadcast %137 : vector<1x32xf32> to vector<16x32xf32>
    %159 = arith.addf %157, %158 : vector<16x32xf32>
    %160 = arith.truncf %159 : vector<16x32xf32> to vector<16x32xbf16>
    %c0_57 = arith.constant 0 : index
    %c0_58 = arith.constant 0 : index
    %161 = vector.load %arg10[%c0_57, %c0_58] : memref<32x64xbf16, #tpu.memory_space<vmem>>, vector<32x64xbf16>
    %cst_59 = arith.constant dense<0.000000e+00> : vector<16x64xf32>
    %162 = tpu.matmul %160, %161, %cst_59 {dimension_numbers = #tpu.dot_dimension_numbers<[1], [0], [0], [1], [0, 0, 1, 1], [], []>} : vector<16x32xbf16>, vector<32x64xbf16>, vector<16x64xf32> -> vector<16x64xf32>
    %c0_60 = arith.constant 0 : index
    %c0_61 = arith.constant 0 : index
    %163 = vector.load %arg11[%c0_60, %c0_61] : memref<1x64xf32, #tpu.memory_space<vmem>>, vector<1x64xf32>
    %164 = vector.broadcast %163 : vector<1x64xf32> to vector<16x64xf32>
    %165 = arith.addf %162, %164 : vector<16x64xf32>
    %cst_62 = arith.constant 5.000000e-01 : f32
    %166 = vector.broadcast %cst_62 : f32 to vector<16x64xf32>
    %167 = arith.mulf %166, %165 : vector<16x64xf32>
    %cst_63 = arith.constant 0.707106769 : f32
    %168 = vector.broadcast %cst_63 : f32 to vector<16x64xf32>
    %169 = arith.mulf %165, %168 : vector<16x64xf32>
    %170 = math.erf %169 : vector<16x64xf32>
    %cst_64 = arith.constant 1.000000e+00 : f32
    %171 = vector.broadcast %cst_64 : f32 to vector<16x64xf32>
    %172 = arith.addf %171, %170 : vector<16x64xf32>
    %173 = arith.mulf %167, %172 : vector<16x64xf32>
    %174 = arith.truncf %173 : vector<16x64xf32> to vector<16x64xbf16>
    %c0_65 = arith.constant 0 : index
    %c0_66 = arith.constant 0 : index
    %175 = vector.load %arg12[%c0_65, %c0_66] : memref<64x32xbf16, #tpu.memory_space<vmem>>, vector<64x32xbf16>
    %cst_67 = arith.constant dense<0.000000e+00> : vector<16x32xf32>
    %176 = tpu.matmul %174, %175, %cst_67 {dimension_numbers = #tpu.dot_dimension_numbers<[1], [0], [0], [1], [0, 0, 1, 1], [], []>} : vector<16x64xbf16>, vector<64x32xbf16>, vector<16x32xf32> -> vector<16x32xf32>
    %c0_68 = arith.constant 0 : index
    %c0_69 = arith.constant 0 : index
    %177 = vector.load %arg13[%c0_68, %c0_69] : memref<1x32xf32, #tpu.memory_space<vmem>>, vector<1x32xf32>
    %178 = vector.broadcast %177 : vector<1x32xf32> to vector<16x32xf32>
    %179 = arith.addf %176, %178 : vector<16x32xf32>
    %180 = arith.addf %135, %179 : vector<16x32xf32>
    %181 = vector.shape_cast %180 : vector<16x32xf32> to vector<2x8x32xf32>
    %c0_70 = arith.constant 0 : index
    %c0_71 = arith.constant 0 : index
    %c0_72 = arith.constant 0 : index
    %182 = vector.load %arg14[%c0_70, %c0_71, %c0_72] : memref<2x8x32xf32, #tpu.memory_space<vmem>>, vector<2x8x32xf32>
    tpu.vector_store %arg14[%c0_70, %c0_71, %c0_72], %181 {strides = array<i32>} : memref<2x8x32xf32, #tpu.memory_space<vmem>>, vector<2x8x32xf32>,
    return
  }
  func.func @transform_0(%arg0: i32) -> (i32, i32, i32) {
    %c0_i32 = arith.constant 0 : i32
    %c0_i32_0 = arith.constant 0 : i32
    %c0_i32_1 = arith.constant 0 : i32
    return %arg0, %c0_i32, %c0_i32_0 : i32, i32, i32
  }
  func.func @transform_1(%arg0: i32) -> (i32, i32) {
    %c0_i32 = arith.constant 0 : i32
    %c0_i32_0 = arith.constant 0 : i32
    %c0_i32_1 = arith.constant 0 : i32
    return %c0_i32, %c0_i32_0 : i32, i32
  }
  func.func @transform_2(%arg0: i32) -> (i32, i32) {
    %c0_i32 = arith.constant 0 : i32
    %c0_i32_0 = arith.constant 0 : i32
    %c0_i32_1 = arith.constant 0 : i32
    return %c0_i32, %c0_i32_0 : i32, i32
  }
  func.func @transform_3(%arg0: i32) -> (i32, i32) {
    %c0_i32 = arith.constant 0 : i32
    %c0_i32_0 = arith.constant 0 : i32
    %c0_i32_1 = arith.constant 0 : i32
    return %c0_i32, %c0_i32_0 : i32, i32
  }
  func.func @transform_4(%arg0: i32) -> (i32, i32) {
    %c0_i32 = arith.constant 0 : i32
    %c0_i32_0 = arith.constant 0 : i32
    %c0_i32_1 = arith.constant 0 : i32
    return %c0_i32, %c0_i32_0 : i32, i32
  }
  func.func @transform_5(%arg0: i32) -> (i32, i32, i32) {
    %c0_i32 = arith.constant 0 : i32
    %c0_i32_0 = arith.constant 0 : i32
    %c0_i32_1 = arith.constant 0 : i32
    %c0_i32_2 = arith.constant 0 : i32
    return %c0_i32, %c0_i32_0, %c0_i32_1 : i32, i32, i32
  }
  func.func @transform_6(%arg0: i32) -> (i32, i32) {
    %c0_i32 = arith.constant 0 : i32
    %c0_i32_0 = arith.constant 0 : i32
    %c0_i32_1 = arith.constant 0 : i32
    return %c0_i32, %c0_i32_0 : i32, i32
  }
  func.func @transform_7(%arg0: i32) -> (i32, i32) {
    %c0_i32 = arith.constant 0 : i32
    %c0_i32_0 = arith.constant 0 : i32
    %c0_i32_1 = arith.constant 0 : i32
    return %c0_i32, %c0_i32_0 : i32, i32
  }
  func.func @transform_8(%arg0: i32) -> (i32, i32) {
    %c0_i32 = arith.constant 0 : i32
    %c0_i32_0 = arith.constant 0 : i32
    %c0_i32_1 = arith.constant 0 : i32
    return %c0_i32, %c0_i32_0 : i32, i32
  }
  func.func @transform_9(%arg0: i32) -> (i32, i32) {
    %c0_i32 = arith.constant 0 : i32
    %c0_i32_0 = arith.constant 0 : i32
    %c0_i32_1 = arith.constant 0 : i32
    return %c0_i32, %c0_i32_0 : i32, i32
  }
  func.func @transform_10(%arg0: i32) -> (i32, i32) {
    %c0_i32 = arith.constant 0 : i32
    %c0_i32_0 = arith.constant 0 : i32
    %c0_i32_1 = arith.constant 0 : i32
    return %c0_i32, %c0_i32_0 : i32, i32
  }
  func.func @transform_11(%arg0: i32) -> (i32, i32) {
    %c0_i32 = arith.constant 0 : i32
    %c0_i32_0 = arith.constant 0 : i32
    %c0_i32_1 = arith.constant 0 : i32
    return %c0_i32, %c0_i32_0 : i32, i32
  }
  func.func @transform_12(%arg0: i32) -> (i32, i32) {
    %c0_i32 = arith.constant 0 : i32
    %c0_i32_0 = arith.constant 0 : i32
    %c0_i32_1 = arith.constant 0 : i32
    return %c0_i32, %c0_i32_0 : i32, i32
  }
  func.func @transform_13(%arg0: i32) -> (i32, i32, i32) {
    %c0_i32 = arith.constant 0 : i32
    %c0_i32_0 = arith.constant 0 : i32
    %c0_i32_1 = arith.constant 0 : i32
    return %arg0, %c0_i32, %c0_i32_0 : i32, i32, i32
  }
}

</mosaic_0001>

<llo_original>
// kernel: tpu_custom_call.1
$region0: #{tpu_custom_call.1}
  #allocation0 [shape = 'u32[]', space=smem, size = 0x4, offset = 0x4, fixed_abs, tag = 'smem constant byte address 0x4 - core index']
  #allocation1 [shape = 'u32[144,128]{1,0:T(1,128)}', space=vmem, size = 0x12000, scoped, tag = 'internal scratch']
  %s0 = inlined_call_operand.vmem [shape: f32[2,8,32], index: 0, kind: input, shape index: {}]
  %s1 = inlined_call_operand.vmem [shape: f32[1,32], index: 1, kind: input, shape index: {}]
  %s2 = inlined_call_operand.vmem [shape: f32[1,32], index: 2, kind: input, shape index: {}]
  %s3 = inlined_call_operand.vmem [shape: bf16[32,96], index: 3, kind: input, shape index: {}]
  %s4 = inlined_call_operand.vmem [shape: f32[1,96], index: 4, kind: input, shape index: {}]
  %s5 = inlined_call_operand.vmem [shape: bf16[4,8,32], index: 5, kind: input, shape index: {}]
  %s6 = inlined_call_operand.vmem [shape: f32[1,32], index: 6, kind: input, shape index: {}]
  %s7 = inlined_call_operand.hbm [shape: f32[1,32], index: 7, kind: input, shape index: {}]
  %s8 = inlined_call_operand.hbm [shape: f32[1,32], index: 8, kind: input, shape index: {}]
  %s9 = inlined_call_operand.hbm [shape: bf16[32,64], index: 9, kind: input, shape index: {}]
  %s10 = inlined_call_operand.hbm [shape: f32[1,64], index: 10, kind: input, shape index: {}]
  %s11 = inlined_call_operand.vmem [shape: bf16[64,32], index: 11, kind: input, shape index: {}]
  %s12 = inlined_call_operand.vmem [shape: f32[1,32], index: 12, kind: input, shape index: {}]
  %s13 = inlined_call_operand.hbm [shape: f32[2,8,32], index: 13, kind: output, shape index: {}]
  %s14 = sld [smem:[#allocation0]]
  $region78: #{tpu_custom_call.1} parent=0
    _
  %s16 = ssub.s32 1, %s14
  %s17 = scalar_select 0, %s16, %s14
  $region1: #{tpu_custom_call.1} parent=0
    #allocation2 [shape = 'u8[512]{0}', space=vmem, size = 0x400, scoped, tag = 'input window, operand 7, single buffered']
    #allocation3 [shape = 's32[1]{0}', space=sflag, size = 0x4, scoped, tag = 'scoped memory for tpu_custom_call.1']
    #allocation4 [shape = 's32[1]{0}', space=sflag, size = 0x4, scoped, tag = 'scoped memory for tpu_custom_call.1']
    #allocation5 [shape = 'u8[512]{0}', space=vmem, size = 0x400, scoped, tag = 'input window, operand 8, single buffered']
    #allocation6 [shape = 's32[1]{0}', space=sflag, size = 0x4, scoped, tag = 'scoped memory for tpu_custom_call.1']
    #allocation7 [shape = 'u8[8192]{0}', space=vmem, size = 0x2000, scoped, tag = 'input window, operand 9, single buffered']
    #allocation8 [shape = 'u8[512]{0}', space=vmem, size = 0x400, scoped, tag = 'input window, operand 10, single buffered']
    #allocation9 [shape = 's32[1]{0}', space=sflag, size = 0x4, scoped, tag = 'scoped memory for tpu_custom_call.1']
    #allocation10 [shape = 'u8[8192]{0}', space=vmem, size = 0x2000, scoped, tag = 'output window, operand 0, single buffered']
    %18 = vsyncpa [#allocation3], 0
    %19 = vsyncpa [#allocation6], 0
    %20 = vsyncpa [#allocation9], 0
    %21 = vsyncpa [#allocation4], 0
    // Predicated region
    $region2: #{tpu_custom_call.1} parent=1 // pred_check
      _
    $region3: #{tpu_custom_call.1} parent=1 // pred_check_branch
      %23 = sbr.rel (0) target = $region5
    $region4: #{tpu_custom_call.1} parent=1 // pred_region
      _
    $region5: #{tpu_custom_call.1} parent=1 // pred_fallthru
      _
    // Predicated region
    $region6: #{tpu_custom_call.1} parent=1 // pred_check
      _
    $region7: #{tpu_custom_call.1} parent=1 // pred_check_branch
      %25 = sbr.rel (0) target = $region9
    $region8: #{tpu_custom_call.1} parent=1 // pred_region
      _
    $region9: #{tpu_custom_call.1} parent=1 // pred_fallthru
      _
    // Predicated region
    $region10: #{tpu_custom_call.1} parent=1 // pred_check
      _
    $region11: #{tpu_custom_call.1} parent=1 // pred_check_branch
      %27 = sbr.rel (0) target = $region13
    $region12: #{tpu_custom_call.1} parent=1 // pred_region
      _
    $region13: #{tpu_custom_call.1} parent=1 // pred_fallthru
      _
    // Predicated region
    $region14: #{tpu_custom_call.1} parent=1 // pred_check
      _
    $region15: #{tpu_custom_call.1} parent=1 // pred_check_branch
      %29 = sbr.rel (0) target = $region17
    $region16: #{tpu_custom_call.1} parent=1 // pred_region
      _
    $region17: #{tpu_custom_call.1} parent=1 // pred_fallthru
      _
    // Predicated region
    $region18: #{tpu_custom_call.1} parent=1 // pred_check
      _
    $region19: #{tpu_custom_call.1} parent=1 // pred_check_branch
      %31 = sbr.rel (0) target = $region21
    $region20: #{tpu_custom_call.1} parent=1 // pred_region
      _
    $region21: #{tpu_custom_call.1} parent=1 // pred_fallthru
      _
    // Predicated region
    $region22: #{tpu_custom_call.1} parent=1 // pred_check
      _
    $region23: #{tpu_custom_call.1} parent=1 // pred_check_branch
      %33 = sbr.rel (0) target = $region25
    $region24: #{tpu_custom_call.1} parent=1 // pred_region
      _
    $region25: #{tpu_custom_call.1} parent=1 // pred_fallthru
      _
    // Predicated region
    $region26: #{tpu_custom_call.1} parent=1 // pred_check
      _
    $region27: #{tpu_custom_call.1} parent=1 // pred_check_branch
      %35 = sbr.rel (0) target = $region29
    $region28: #{tpu_custom_call.1} parent=1 // pred_region
      _
    $region29: #{tpu_custom_call.1} parent=1 // pred_fallthru
      _
    // Predicated region
    $region30: #{tpu_custom_call.1} parent=1 // pred_check
      _
    $region31: #{tpu_custom_call.1} parent=1 // pred_check_branch
      %37 = sbr.rel (0) target = $region33
    $region32: #{tpu_custom_call.1} parent=1 // pred_region
      %s39 = ssub.s32 16, 16
      %40 = vsyncadd [#allocation3], %s39
      %s42 = sshll.u32 [#allocation2], 4
      %s43 = int_to_ptr.vmem [resolvable:$true] %s42
      %45 = dma.hbm_to_vmem [thread:$0]  %s7, 16, %s43, [#allocation3]
    $region33: #{tpu_custom_call.1} parent=1 // pred_fallthru
      _
    // Predicated region
    $region34: #{tpu_custom_call.1} parent=1 // pred_check
      _
    $region35: #{tpu_custom_call.1} parent=1 // pred_check_branch
      %47 = sbr.rel (0) target = $region37
    $region36: #{tpu_custom_call.1} parent=1 // pred_region
      %s49 = ssub.s32 16, 16
      %50 = vsyncadd [#allocation6], %s49
      %s52 = sshll.u32 [#allocation5], 4
      %s53 = int_to_ptr.vmem [resolvable:$true] %s52
      %55 = dma.hbm_to_vmem [thread:$0]  %s8, 16, %s53, [#allocation6]
    $region37: #{tpu_custom_call.1} parent=1 // pred_fallthru
      _
    // Predicated region
    $region38: #{tpu_custom_call.1} parent=1 // pred_check
      _
    $region39: #{tpu_custom_call.1} parent=1 // pred_check_branch
      %57 = sbr.rel (0) target = $region41
    $region40: #{tpu_custom_call.1} parent=1 // pred_region
      %s59 = ssub.s32 256, 256
      %60 = vsyncadd [#allocation6], %s59
      %s61 = sshll.u32 [#allocation7], 4
      %s62 = int_to_ptr.vmem [resolvable:$true] %s61
      %67 = dma.hbm_to_vmem [thread:$0]  %s9, 256, %s62, [#allocation6], 64, 64, 4
    $region41: #{tpu_custom_call.1} parent=1 // pred_fallthru
      _
    // Predicated region
    $region42: #{tpu_custom_call.1} parent=1 // pred_check
      _
    $region43: #{tpu_custom_call.1} parent=1 // pred_check_branch
      %69 = sbr.rel (0) target = $region45
    $region44: #{tpu_custom_call.1} parent=1 // pred_region
      %s71 = ssub.s32 16, 16
      %72 = vsyncadd [#allocation9], %s71
      %s74 = sshll.u32 [#allocation8], 4
      %s75 = int_to_ptr.vmem [resolvable:$true] %s74
      %77 = dma.hbm_to_vmem [thread:$0]  %s10, 16, %s75, [#allocation9]
    $region45: #{tpu_custom_call.1} parent=1 // pred_fallthru
      _
    // Predicated region
    $region46: #{tpu_custom_call.1} parent=1 // pred_check
      _
    $region47: #{tpu_custom_call.1} parent=1 // pred_check_branch
      %79 = sbr.rel (0) target = $region49
    $region48: #{tpu_custom_call.1} parent=1 // pred_region
      _
    $region49: #{tpu_custom_call.1} parent=1 // pred_fallthru
      _
    // Predicated region
    $region50: #{tpu_custom_call.1} parent=1 // pred_check
      _
    $region51: #{tpu_custom_call.1} parent=1 // pred_check_branch
      %81 = sbr.rel (0) target = $region53
    $region52: #{tpu_custom_call.1} parent=1 // pred_region
      _
    $region53: #{tpu_custom_call.1} parent=1 // pred_fallthru
      _
    // Predicated region
    $region54: #{tpu_custom_call.1} parent=1 // pred_check
      _
    $region55: #{tpu_custom_call.1} parent=1 // pred_check_branch
      %83 = sbr.rel (0) target = $region57
    $region56: #{tpu_custom_call.1} parent=1 // pred_region
      %84 = dma.done [#allocation3], 16
    $region57: #{tpu_custom_call.1} parent=1 // pred_fallthru
      _
    // Predicated region
    $region58: #{tpu_custom_call.1} parent=1 // pred_check
      _
    $region59: #{tpu_custom_call.1} parent=1 // pred_check_branch
      %86 = sbr.rel (0) target = $region61
    $region60: #{tpu_custom_call.1} parent=1 // pred_region
      %87 = dma.done [#allocation6], 16
    $region61: #{tpu_custom_call.1} parent=1 // pred_fallthru
      _
    // Predicated region
    $region62: #{tpu_custom_call.1} parent=1 // pred_check
      _
    $region63: #{tpu_custom_call.1} parent=1 // pred_check_branch
      %89 = sbr.rel (0) target = $region65
    $region64: #{tpu_custom_call.1} parent=1 // pred_region
      %90 = dma.done [#allocation6], 256
    $region65: #{tpu_custom_call.1} parent=1 // pred_fallthru
      _
    // Predicated region
    $region66: #{tpu_custom_call.1} parent=1 // pred_check
      _
    $region67: #{tpu_custom_call.1} parent=1 // pred_check_branch
      %92 = sbr.rel (0) target = $region69
    $region68: #{tpu_custom_call.1} parent=1 // pred_region
      %93 = dma.done [#allocation9], 16
    $region69: #{tpu_custom_call.1} parent=1 // pred_fallthru
      _
    %v95 = vld [vmem:[%s0] sm:$0xff]
    %v96 = vld [vmem:[%s0 + $0x8] sm:$0xff]
    %v97 = vld [vmem:[%s1] sm:$0x1]
    %v98 = vld [vmem:[%s2] sm:$0x1]
    %vm99 = vcmask 261120
    %v100 = vsel %vm99, %v95, 0.0
    %101 = vadd.xlane.f32.xlu0 %v100
    %v102 = vpop.xlane.xlu0 %101
    %v103 = vsel %vm99, %v96, 0.0
    %104 = vadd.xlane.f32.xlu0 %v103
    %v105 = vpop.xlane.xlu0 %104
    %v106 = vrcp.pop 32.0
    %v107 = vmul.f32 %v102, %v106
    %v108 = vmul.f32 %v105, %v106
    %v109 = vsub.f32 %v95, %v107
    %v110 = vsub.f32 %v96, %v108
    %v111 = vmul.f32 %v109, %v109
    %v112 = vmul.f32 %v110, %v110
    %v113 = vsel %vm99, %v111, 0.0
    %114 = vadd.xlane.f32.xlu0 %v113
    %v115 = vpop.xlane.xlu0 %114
    %v116 = vsel %vm99, %v112, 0.0
    %117 = vadd.xlane.f32.xlu0 %v116
    %v118 = vpop.xlane.xlu0 %117
    %v119 = vmul.f32 %v115, %v106
    %v120 = vmul.f32 %v118, %v106
    %v121 = vadd.f32 %v119, 1e-05
    %v122 = vadd.f32 %v120, 1e-05
    %v123 = vrsqrt.pop %v121
    %v124 = vrsqrt.pop %v122
    %v125 = vmul.f32 %v109, %v123
    %v126 = vmul.f32 %v110, %v124
    %v128 = vlaneseq
    %v129 = vshrl.u32 %v128, 7
    %v130 = vsub.s32 0, %v129
    %v131 = vrot.slane %v97, %v130
    %v133 = vmul.f32 %v125, %v131
    %v134 = vmul.f32 %v126, %v131
    %v136 = vlaneseq
    %v137 = vshrl.u32 %v136, 7
    %v138 = vsub.s32 0, %v137
    %v139 = vrot.slane %v98, %v138
    %v141 = vadd.f32 %v133, %v139
    %v142 = vadd.f32 %v134, %v139
    %v143 = vpack.c.bf16 %v142, %v141
    %v144 = vld [vmem:[%s3] sm:$0xf]
    %v145 = vld [vmem:[%s3 + $0x4] sm:$0xf]
    %v146 = vld [vmem:[%s3 + $0x8] sm:$0xf]
    %v147 = vld [vmem:[%s3 + $0xc] sm:$0xf]
    %v148 = vld [vmem:[%s4] sm:$0x1]
    %v150 = vlaneseq
    %v151 = vshrl.u32 %v150, 7
    %v152 = vsub.s32 0, %v151
    %v153 = vrot.slane %v148, %v152
    %v159 = vunpack.c.l.b16 %v144
    %v160 = vunpack.c.l.b16 %v145
    %v161 = vunpack.c.l.b16 %v146
    %v162 = vunpack.c.l.b16 %v147
    %v163 = vpack.c.b16 %v160, %v159
    %v164 = vpack.c.b16 %v162, %v161
    %v168 = vsel %vm99, %v143, 0
    %170 = vmatprep.subr.bf16.mxu0 0
    %171 = vmatpush1.bf16.msra.mxu0 0
    %172 = vmatprep.subr.bf16.mxu0 0
    %173 = vmatpush1.bf16.msra.mxu0 0
    %174 = vmatprep.subr.bf16.mxu0 0
    %175 = vmatpush1.bf16.msra.mxu0 0
    %176 = vmatprep.subr.bf16.mxu0 0
    %177 = vmatpush1.bf16.msra.mxu0 0
    %178 = vmatprep.subr.bf16.mxu0 0
    %179 = vmatpush1.bf16.msra.mxu0 0
    %180 = vmatprep.subr.bf16.mxu0 0
    %181 = vmatpush1.bf16.msra.mxu0 0
    %182 = vmatprep.subr.bf16.mxu0 0
    %183 = vmatpush1.bf16.msra.mxu0 %v164
    %184 = vmatprep.subr.bf16.mxu0 0
    %185 = vmatpush1.bf16.msra.mxu0 %v163
    %186 = vmatprep.subr.bf16.mxu0 0
    %187 = vmatpush2.bf16.msra.mxu0 0
    %188 = vmatprep.subr.bf16.mxu0 0
    %189 = vmatpush2.bf16.msra.mxu0 0
    %190 = vmatprep.subr.bf16.mxu0 0
    %191 = vmatpush2.bf16.msra.mxu0 0
    %192 = vmatprep.subr.bf16.mxu0 0
    %193 = vmatpush2.bf16.msra.mxu0 0
    %194 = vmatprep.subr.bf16.mxu0 0
    %195 = vmatpush2.bf16.msra.mxu0 0
    %196 = vmatprep.subr.bf16.mxu0 0
    %197 = vmatpush2.bf16.msra.mxu0 0
    %198 = vmatprep.subr.bf16.mxu0 0
    %199 = vmatpush2.bf16.msra.mxu0 0
    %200 = vmatprep.subr.bf16.mxu0 0
    %201 = vmatpush2.bf16.msra.mxu0 0
    %202 = vmatprep.mubr.bf16.mxu0 0
    %203 = vmatmul.mubr.bf16.gmra.mxu0 %v168
    %v204 = vpop.f32.mrf.mxu0
    %v205 = vadd.f32 %v153, %v204
    %v206 = vpop.f32.mrf.mxu0
    %v207 = vpop.f32.mrf.mxu0
    %v208 = vadd.f32 %v153, %v207
    %v209 = vpop.f32.mrf.mxu0
    %210 = vdwg.mxu0
    %v211 = vmul.f32 %v205, 0.35355338
    %v212 = vmul.f32 %v208, 0.35355338
    %v213 = vpack.c.bf16 %v211, %v211
    %v214 = vpack.c.bf16 %v212, %v212
    %v215 = vpack.c.bf16 %v205, %v205
    %v216 = vpack.c.bf16 %v208, %v208
    %218 = vrot.lane.b32.xlu0 %v215, 96
    %v219 = vpop.permute.xlu0 %218
    %vm220 = vcmask 64512
    %v222 = vsel %vm220, %v213, 0
    %v225 = vsel %vm220, %v219, 0
    %227 = vmatprep.subr.bf16.mxu0 0
    %228 = vmatpush1.bf16.xpose.msra.mxu0 0
    %229 = vmatprep.subr.bf16.mxu0 0
    %230 = vmatpush1.bf16.xpose.msra.mxu0 0
    %231 = vmatprep.subr.bf16.mxu0 0
    %232 = vmatpush1.bf16.xpose.msra.mxu0 0
    %233 = vmatprep.subr.bf16.mxu0 0
    %234 = vmatpush1.bf16.xpose.msra.mxu0 0
    %235 = vmatprep.subr.bf16.mxu0 0
    %236 = vmatpush1.bf16.xpose.msra.mxu0 0
    %237 = vmatprep.subr.bf16.mxu0 0
    %238 = vmatpush1.bf16.xpose.msra.mxu0 0
    %239 = vmatprep.subr.bf16.mxu0 0
    %240 = vmatpush1.bf16.xpose.msra.mxu0 0
    %241 = vmatprep.subr.bf16.mxu0 0
    %242 = vmatpush1.bf16.xpose.msra.mxu0 %v225
    %243 = vmatprep.subr.bf16.mxu0 0
    %244 = vmatpush2.bf16.xpose.msra.mxu0 0
    %245 = vmatprep.subr.bf16.mxu0 0
    %246 = vmatpush2.bf16.xpose.msra.mxu0 0
    %247 = vmatprep.subr.bf16.mxu0 0
    %248 = vmatpush2.bf16.xpose.msra.mxu0 0
    %249 = vmatprep.subr.bf16.mxu0 0
    %250 = vmatpush2.bf16.xpose.msra.mxu0 0
    %251 = vmatprep.subr.bf16.mxu0 0
    %252 = vmatpush2.bf16.xpose.msra.mxu0 0
    %253 = vmatprep.subr.bf16.mxu0 0
    %254 = vmatpush2.bf16.xpose.msra.mxu0 0
    %255 = vmatprep.subr.bf16.mxu0 0
    %256 = vmatpush2.bf16.xpose.msra.mxu0 0
    %257 = vmatprep.subr.bf16.mxu0 0
    %258 = vmatpush2.bf16.xpose.msra.mxu0 0
    %259 = vmatprep.mubr.bf16.mxu0 0
    %260 = vmatmul.mubr.bf16.gmra.mxu0 %v222
    %v261 = vpop.f32.mrf.mxu0
    %v262 = vadd.f32 0.0, %v261
    %v263 = vpop.f32.mrf.mxu0
    %v264 = vpop.f32.mrf.mxu0
    %v265 = vpop.f32.mrf.mxu0
    %266 = vdwg.mxu0
    %268 = vrot.lane.b32.xlu0 %v216, 96
    %v269 = vpop.permute.xlu0 %268
    %v271 = vsel %vm220, %v214, 0
    %v274 = vsel %vm220, %v269, 0
    %276 = vmatprep.subr.bf16.mxu0 0
    %277 = vmatpush1.bf16.xpose.msra.mxu0 0
    %278 = vmatprep.subr.bf16.mxu0 0
    %279 = vmatpush1.bf16.xpose.msra.mxu0 0
    %280 = vmatprep.subr.bf16.mxu0 0
    %281 = vmatpush1.bf16.xpose.msra.mxu0 0
    %282 = vmatprep.subr.bf16.mxu0 0
    %283 = vmatpush1.bf16.xpose.msra.mxu0 0
    %284 = vmatprep.subr.bf16.mxu0 0
    %285 = vmatpush1.bf16.xpose.msra.mxu0 0
    %286 = vmatprep.subr.bf16.mxu0 0
    %287 = vmatpush1.bf16.xpose.msra.mxu0 0
    %288 = vmatprep.subr.bf16.mxu0 0
    %289 = vmatpush1.bf16.xpose.msra.mxu0 0
    %290 = vmatprep.subr.bf16.mxu0 0
    %291 = vmatpush1.bf16.xpose.msra.mxu0 %v274
    %292 = vmatprep.subr.bf16.mxu0 0
    %293 = vmatpush2.bf16.xpose.msra.mxu0 0
    %294 = vmatprep.subr.bf16.mxu0 0
    %295 = vmatpush2.bf16.xpose.msra.mxu0 0
    %296 = vmatprep.subr.bf16.mxu0 0
    %297 = vmatpush2.bf16.xpose.msra.mxu0 0
    %298 = vmatprep.subr.bf16.mxu0 0
    %299 = vmatpush2.bf16.xpose.msra.mxu0 0
    %300 = vmatprep.subr.bf16.mxu0 0
    %301 = vmatpush2.bf16.xpose.msra.mxu0 0
    %302 = vmatprep.subr.bf16.mxu0 0
    %303 = vmatpush2.bf16.xpose.msra.mxu0 0
    %304 = vmatprep.subr.bf16.mxu0 0
    %305 = vmatpush2.bf16.xpose.msra.mxu0 0
    %306 = vmatprep.subr.bf16.mxu0 0
    %307 = vmatpush2.bf16.xpose.msra.mxu0 0
    %308 = vmatprep.mubr.bf16.mxu0 0
    %309 = vmatmul.mubr.bf16.gmra.mxu0 %v271
    %v310 = vpop.f32.mrf.mxu0
    %v311 = vadd.f32 0.0, %v310
    %v312 = vpop.f32.mrf.mxu0
    %v313 = vpop.f32.mrf.mxu0
    %v314 = vpop.f32.mrf.mxu0
    %315 = vdwg.mxu0
    %v316 = vsel %vm220, %v262, -inf
    %317 = vmax.xlane.f32.xlu0 %v316
    %v318 = vpop.xlane.xlu0 %317
    %v319 = vsel %vm220, %v311, -inf
    %320 = vmax.xlane.f32.xlu0 %v319
    %v321 = vpop.xlane.xlu0 %320
    %v322 = vsub.f32 %v262, %v318
    %v323 = vsub.f32 %v311, %v321
    %v324 = vmul.f32 %v322, 1.442695
    %v325 = vpow.pop %v324
    %v326 = vmul.f32 %v323, 1.442695
    %v327 = vpow.pop %v326
    %v328 = vsel %vm220, %v325, 0.0
    %329 = vadd.xlane.f32.xlu0 %v328
    %v330 = vpop.xlane.xlu0 %329
    %v331 = vsel %vm220, %v327, 0.0
    %332 = vadd.xlane.f32.xlu0 %v331
    %v333 = vpop.xlane.xlu0 %332
    %v334 = vrcp.pop %v330
    %v335 = vrcp.pop %v333
    %v336 = vmul.f32 %v325, %v334
    %v337 = vmul.f32 %v327, %v335
    %v338 = vpack.c.bf16 %v336, %v336
    %v339 = vpack.c.bf16 %v337, %v337
    %340 = vrot.lane.b32.xlu0 %v215, 64
    %v341 = vpop.permute.xlu0 %340
    %v343 = vsel %vm220, %v338, 0
    %vm345 = vcmask 1043456
    %v347 = vsel %vm345, %v341, 0
    %349 = vmatprep.subr.bf16.mxu0 0
    %350 = vmatpush1.bf16.msra.mxu0 0
    %351 = vmatprep.subr.bf16.mxu0 0
    %352 = vmatpush1.bf16.msra.mxu0 0
    %353 = vmatprep.subr.bf16.mxu0 0
    %354 = vmatpush1.bf16.msra.mxu0 0
    %355 = vmatprep.subr.bf16.mxu0 0
    %356 = vmatpush1.bf16.msra.mxu0 0
    %357 = vmatprep.subr.bf16.mxu0 0
    %358 = vmatpush1.bf16.msra.mxu0 0
    %359 = vmatprep.subr.bf16.mxu0 0
    %360 = vmatpush1.bf16.msra.mxu0 0
    %361 = vmatprep.subr.bf16.mxu0 0
    %362 = vmatpush1.bf16.msra.mxu0 0
    %363 = vmatprep.subr.bf16.mxu0 0
    %364 = vmatpush1.bf16.msra.mxu0 %v347
    %365 = vmatprep.subr.bf16.mxu0 0
    %366 = vmatpush2.bf16.msra.mxu0 0
    %367 = vmatprep.subr.bf16.mxu0 0
    %368 = vmatpush2.bf16.msra.mxu0 0
    %369 = vmatprep.subr.bf16.mxu0 0
    %370 = vmatpush2.bf16.msra.mxu0 0
    %371 = vmatprep.subr.bf16.mxu0 0
    %372 = vmatpush2.bf16.msra.mxu0 0
    %373 = vmatprep.subr.bf16.mxu0 0
    %374 = vmatpush2.bf16.msra.mxu0 0
    %375 = vmatprep.subr.bf16.mxu0 0
    %376 = vmatpush2.bf16.msra.mxu0 0
    %377 = vmatprep.subr.bf16.mxu0 0
    %378 = vmatpush2.bf16.msra.mxu0 0
    %379 = vmatprep.subr.bf16.mxu0 0
    %380 = vmatpush2.bf16.msra.mxu0 0
    %381 = vmatprep.mubr.bf16.mxu0 0
    %382 = vmatmul.mubr.bf16.gmra.mxu0 %v343
    %v383 = vpop.f32.mrf.mxu0
    %v384 = vadd.f32 0.0, %v383
    %v385 = vpop.f32.mrf.mxu0
    %v386 = vpop.f32.mrf.mxu0
    %v387 = vpop.f32.mrf.mxu0
    %388 = vdwg.mxu0
    %389 = vrot.lane.b32.xlu0 %v216, 64
    %v390 = vpop.permute.xlu0 %389
    %v392 = vsel %vm220, %v339, 0
    %v395 = vsel %vm345, %v390, 0
    %397 = vmatprep.subr.bf16.mxu0 0
    %398 = vmatpush1.bf16.msra.mxu0 0
    %399 = vmatprep.subr.bf16.mxu0 0
    %400 = vmatpush1.bf16.msra.mxu0 0
    %401 = vmatprep.subr.bf16.mxu0 0
    %402 = vmatpush1.bf16.msra.mxu0 0
    %403 = vmatprep.subr.bf16.mxu0 0
    %404 = vmatpush1.bf16.msra.mxu0 0
    %405 = vmatprep.subr.bf16.mxu0 0
    %406 = vmatpush1.bf16.msra.mxu0 0
    %407 = vmatprep.subr.bf16.mxu0 0
    %408 = vmatpush1.bf16.msra.mxu0 0
    %409 = vmatprep.subr.bf16.mxu0 0
    %410 = vmatpush1.bf16.msra.mxu0 0
    %411 = vmatprep.subr.bf16.mxu0 0
    %412 = vmatpush1.bf16.msra.mxu0 %v395
    %413 = vmatprep.subr.bf16.mxu0 0
    %414 = vmatpush2.bf16.msra.mxu0 0
    %415 = vmatprep.subr.bf16.mxu0 0
    %416 = vmatpush2.bf16.msra.mxu0 0
    %417 = vmatprep.subr.bf16.mxu0 0
    %418 = vmatpush2.bf16.msra.mxu0 0
    %419 = vmatprep.subr.bf16.mxu0 0
    %420 = vmatpush2.bf16.msra.mxu0 0
    %421 = vmatprep.subr.bf16.mxu0 0
    %422 = vmatpush2.bf16.msra.mxu0 0
    %423 = vmatprep.subr.bf16.mxu0 0
    %424 = vmatpush2.bf16.msra.mxu0 0
    %425 = vmatprep.subr.bf16.mxu0 0
    %426 = vmatpush2.bf16.msra.mxu0 0
    %427 = vmatprep.subr.bf16.mxu0 0
    %428 = vmatpush2.bf16.msra.mxu0 0
    %429 = vmatprep.mubr.bf16.mxu0 0
    %430 = vmatmul.mubr.bf16.gmra.mxu0 %v392
    %v431 = vpop.f32.mrf.mxu0
    %v432 = vadd.f32 0.0, %v431
    %v433 = vpop.f32.mrf.mxu0
    %v434 = vpop.f32.mrf.mxu0
    %v435 = vpop.f32.mrf.mxu0
    %436 = vdwg.mxu0
    %v437 = vpack.c.bf16 %v432, %v384
    %v438 = vld [vmem:[%s5] sm:$0xf]
    %440 = vrot.lane.b32.xlu0 %v213, 120
    %v441 = vpop.permute.xlu0 %440
    %442 = vrot.lane.b32.xlu0 %v215, 88
    %v443 = vpop.permute.xlu0 %442
    %v445 = vsel %vm220, %v441, 0
    %v448 = vsel %vm220, %v443, 0
    %450 = vmatprep.subr.bf16.mxu0 0
    %451 = vmatpush1.bf16.xpose.msra.mxu0 0
    %452 = vmatprep.subr.bf16.mxu0 0
    %453 = vmatpush1.bf16.xpose.msra.mxu0 0
    %454 = vmatprep.subr.bf16.mxu0 0
    %455 = vmatpush1.bf16.xpose.msra.mxu0 0
    %456 = vmatprep.subr.bf16.mxu0 0
    %457 = vmatpush1.bf16.xpose.msra.mxu0 0
    %458 = vmatprep.subr.bf16.mxu0 0
    %459 = vmatpush1.bf16.xpose.msra.mxu0 0
    %460 = vmatprep.subr.bf16.mxu0 0
    %461 = vmatpush1.bf16.xpose.msra.mxu0 0
    %462 = vmatprep.subr.bf16.mxu0 0
    %463 = vmatpush1.bf16.xpose.msra.mxu0 0
    %464 = vmatprep.subr.bf16.mxu0 0
    %465 = vmatpush1.bf16.xpose.msra.mxu0 %v448
    %466 = vmatprep.subr.bf16.mxu0 0
    %467 = vmatpush2.bf16.xpose.msra.mxu0 0
    %468 = vmatprep.subr.bf16.mxu0 0
    %469 = vmatpush2.bf16.xpose.msra.mxu0 0
    %470 = vmatprep.subr.bf16.mxu0 0
    %471 = vmatpush2.bf16.xpose.msra.mxu0 0
    %472 = vmatprep.subr.bf16.mxu0 0
    %473 = vmatpush2.bf16.xpose.msra.mxu0 0
    %474 = vmatprep.subr.bf16.mxu0 0
    %475 = vmatpush2.bf16.xpose.msra.mxu0 0
    %476 = vmatprep.subr.bf16.mxu0 0
    %477 = vmatpush2.bf16.xpose.msra.mxu0 0
    %478 = vmatprep.subr.bf16.mxu0 0
    %479 = vmatpush2.bf16.xpose.msra.mxu0 0
    %480 = vmatprep.subr.bf16.mxu0 0
    %481 = vmatpush2.bf16.xpose.msra.mxu0 0
    %482 = vmatprep.mubr.bf16.mxu0 0
    %483 = vmatmul.mubr.bf16.gmra.mxu0 %v445
    %v484 = vpop.f32.mrf.mxu0
    %v485 = vadd.f32 0.0, %v484
    %v486 = vpop.f32.mrf.mxu0
    %v487 = vpop.f32.mrf.mxu0
    %v488 = vpop.f32.mrf.mxu0
    %489 = vdwg.mxu0
    %491 = vrot.lane.b32.xlu0 %v214, 120
    %v492 = vpop.permute.xlu0 %491
    %493 = vrot.lane.b32.xlu0 %v216, 88
    %v494 = vpop.permute.xlu0 %493
    %v496 = vsel %vm220, %v492, 0
    %v499 = vsel %vm220, %v494, 0
    %501 = vmatprep.subr.bf16.mxu0 0
    %502 = vmatpush1.bf16.xpose.msra.mxu0 0
    %503 = vmatprep.subr.bf16.mxu0 0
    %504 = vmatpush1.bf16.xpose.msra.mxu0 0
    %505 = vmatprep.subr.bf16.mxu0 0
    %506 = vmatpush1.bf16.xpose.msra.mxu0 0
    %507 = vmatprep.subr.bf16.mxu0 0
    %508 = vmatpush1.bf16.xpose.msra.mxu0 0
    %509 = vmatprep.subr.bf16.mxu0 0
    %510 = vmatpush1.bf16.xpose.msra.mxu0 0
    %511 = vmatprep.subr.bf16.mxu0 0
    %512 = vmatpush1.bf16.xpose.msra.mxu0 0
    %513 = vmatprep.subr.bf16.mxu0 0
    %514 = vmatpush1.bf16.xpose.msra.mxu0 0
    %515 = vmatprep.subr.bf16.mxu0 0
    %516 = vmatpush1.bf16.xpose.msra.mxu0 %v499
    %517 = vmatprep.subr.bf16.mxu0 0
    %518 = vmatpush2.bf16.xpose.msra.mxu0 0
    %519 = vmatprep.subr.bf16.mxu0 0
    %520 = vmatpush2.bf16.xpose.msra.mxu0 0
    %521 = vmatprep.subr.bf16.mxu0 0
    %522 = vmatpush2.bf16.xpose.msra.mxu0 0
    %523 = vmatprep.subr.bf16.mxu0 0
    %524 = vmatpush2.bf16.xpose.msra.mxu0 0
    %525 = vmatprep.subr.bf16.mxu0 0
    %526 = vmatpush2.bf16.xpose.msra.mxu0 0
    %527 = vmatprep.subr.bf16.mxu0 0
    %528 = vmatpush2.bf16.xpose.msra.mxu0 0
    %529 = vmatprep.subr.bf16.mxu0 0
    %530 = vmatpush2.bf16.xpose.msra.mxu0 0
    %531 = vmatprep.subr.bf16.mxu0 0
    %532 = vmatpush2.bf16.xpose.msra.mxu0 0
    %533 = vmatprep.mubr.bf16.mxu0 0
    %534 = vmatmul.mubr.bf16.gmra.mxu0 %v496
    %v535 = vpop.f32.mrf.mxu0
    %v536 = vadd.f32 0.0, %v535
    %v537 = vpop.f32.mrf.mxu0
    %v538 = vpop.f32.mrf.mxu0
    %v539 = vpop.f32.mrf.mxu0
    %540 = vdwg.mxu0
    %v541 = vsel %vm220, %v485, -inf
    %542 = vmax.xlane.f32.xlu0 %v541
    %v543 = vpop.xlane.xlu0 %542
    %v544 = vsel %vm220, %v536, -inf
    %545 = vmax.xlane.f32.xlu0 %v544
    %v546 = vpop.xlane.xlu0 %545
    %v547 = vsub.f32 %v485, %v543
    %v548 = vsub.f32 %v536, %v546
    %v549 = vmul.f32 %v547, 1.442695
    %v550 = vpow.pop %v549
    %v551 = vmul.f32 %v548, 1.442695
    %v552 = vpow.pop %v551
    %v553 = vsel %vm220, %v550, 0.0
    %554 = vadd.xlane.f32.xlu0 %v553
    %v555 = vpop.xlane.xlu0 %554
    %v556 = vsel %vm220, %v552, 0.0
    %557 = vadd.xlane.f32.xlu0 %v556
    %v558 = vpop.xlane.xlu0 %557
    %v559 = vrcp.pop %v555
    %v560 = vrcp.pop %v558
    %v561 = vmul.f32 %v550, %v559
    %v562 = vmul.f32 %v552, %v560
    %v563 = vpack.c.bf16 %v561, %v561
    %v564 = vpack.c.bf16 %v562, %v562
    %565 = vrot.lane.b32.xlu0 %v215, 56
    %v566 = vpop.permute.xlu0 %565
    %v568 = vsel %vm220, %v563, 0
    %v571 = vsel %vm345, %v566, 0
    %573 = vmatprep.subr.bf16.mxu0 0
    %574 = vmatpush1.bf16.msra.mxu0 0
    %575 = vmatprep.subr.bf16.mxu0 0
    %576 = vmatpush1.bf16.msra.mxu0 0
    %577 = vmatprep.subr.bf16.mxu0 0
    %578 = vmatpush1.bf16.msra.mxu0 0
    %579 = vmatprep.subr.bf16.mxu0 0
    %580 = vmatpush1.bf16.msra.mxu0 0
    %581 = vmatprep.subr.bf16.mxu0 0
    %582 = vmatpush1.bf16.msra.mxu0 0
    %583 = vmatprep.subr.bf16.mxu0 0
    %584 = vmatpush1.bf16.msra.mxu0 0
    %585 = vmatprep.subr.bf16.mxu0 0
    %586 = vmatpush1.bf16.msra.mxu0 0
    %587 = vmatprep.subr.bf16.mxu0 0
    %588 = vmatpush1.bf16.msra.mxu0 %v571
    %589 = vmatprep.subr.bf16.mxu0 0
    %590 = vmatpush2.bf16.msra.mxu0 0
    %591 = vmatprep.subr.bf16.mxu0 0
    %592 = vmatpush2.bf16.msra.mxu0 0
    %593 = vmatprep.subr.bf16.mxu0 0
    %594 = vmatpush2.bf16.msra.mxu0 0
    %595 = vmatprep.subr.bf16.mxu0 0
    %596 = vmatpush2.bf16.msra.mxu0 0
    %597 = vmatprep.subr.bf16.mxu0 0
    %598 = vmatpush2.bf16.msra.mxu0 0
    %599 = vmatprep.subr.bf16.mxu0 0
    %600 = vmatpush2.bf16.msra.mxu0 0
    %601 = vmatprep.subr.bf16.mxu0 0
    %602 = vmatpush2.bf16.msra.mxu0 0
    %603 = vmatprep.subr.bf16.mxu0 0
    %604 = vmatpush2.bf16.msra.mxu0 0
    %605 = vmatprep.mubr.bf16.mxu0 0
    %606 = vmatmul.mubr.bf16.gmra.mxu0 %v568
    %v607 = vpop.f32.mrf.mxu0
    %v608 = vadd.f32 0.0, %v607
    %v609 = vpop.f32.mrf.mxu0
    %v610 = vpop.f32.mrf.mxu0
    %v611 = vpop.f32.mrf.mxu0
    %612 = vdwg.mxu0
    %613 = vrot.lane.b32.xlu0 %v216, 56
    %v614 = vpop.permute.xlu0 %613
    %v616 = vsel %vm220, %v564, 0
    %v619 = vsel %vm345, %v614, 0
    %621 = vmatprep.subr.bf16.mxu0 0
    %622 = vmatpush1.bf16.msra.mxu0 0
    %623 = vmatprep.subr.bf16.mxu0 0
    %624 = vmatpush1.bf16.msra.mxu0 0
    %625 = vmatprep.subr.bf16.mxu0 0
    %626 = vmatpush1.bf16.msra.mxu0 0
    %627 = vmatprep.subr.bf16.mxu0 0
    %628 = vmatpush1.bf16.msra.mxu0 0
    %629 = vmatprep.subr.bf16.mxu0 0
    %630 = vmatpush1.bf16.msra.mxu0 0
    %631 = vmatprep.subr.bf16.mxu0 0
    %632 = vmatpush1.bf16.msra.mxu0 0
    %633 = vmatprep.subr.bf16.mxu0 0
    %634 = vmatpush1.bf16.msra.mxu0 0
    %635 = vmatprep.subr.bf16.mxu0 0
    %636 = vmatpush1.bf16.msra.mxu0 %v619
    %637 = vmatprep.subr.bf16.mxu0 0
    %638 = vmatpush2.bf16.msra.mxu0 0
    %639 = vmatprep.subr.bf16.mxu0 0
    %640 = vmatpush2.bf16.msra.mxu0 0
    %641 = vmatprep.subr.bf16.mxu0 0
    %642 = vmatpush2.bf16.msra.mxu0 0
    %643 = vmatprep.subr.bf16.mxu0 0
    %644 = vmatpush2.bf16.msra.mxu0 0
    %645 = vmatprep.subr.bf16.mxu0 0
    %646 = vmatpush2.bf16.msra.mxu0 0
    %647 = vmatprep.subr.bf16.mxu0 0
    %648 = vmatpush2.bf16.msra.mxu0 0
    %649 = vmatprep.subr.bf16.mxu0 0
    %650 = vmatpush2.bf16.msra.mxu0 0
    %651 = vmatprep.subr.bf16.mxu0 0
    %652 = vmatpush2.bf16.msra.mxu0 0
    %653 = vmatprep.mubr.bf16.mxu0 0
    %654 = vmatmul.mubr.bf16.gmra.mxu0 %v616
    %v655 = vpop.f32.mrf.mxu0
    %v656 = vadd.f32 0.0, %v655
    %v657 = vpop.f32.mrf.mxu0
    %v658 = vpop.f32.mrf.mxu0
    %v659 = vpop.f32.mrf.mxu0
    %660 = vdwg.mxu0
    %v661 = vpack.c.bf16 %v656, %v608
    %s662 = scalar_lea.vmem %s5, 4
    %v663 = vld [vmem:[%s662] sm:$0xf]
    %v665 = vsel %vm220, %v661, 0
    %v668 = vsel %vm345, %v663, 0
    %670 = vmatprep.subr.bf16.mxu0 0
    %671 = vmatpush1.bf16.msra.mxu0 0
    %672 = vmatprep.subr.bf16.mxu0 0
    %673 = vmatpush1.bf16.msra.mxu0 0
    %674 = vmatprep.subr.bf16.mxu0 0
    %675 = vmatpush1.bf16.msra.mxu0 0
    %676 = vmatprep.subr.bf16.mxu0 0
    %677 = vmatpush1.bf16.msra.mxu0 0
    %678 = vmatprep.subr.bf16.mxu0 0
    %679 = vmatpush1.bf16.msra.mxu0 0
    %680 = vmatprep.subr.bf16.mxu0 0
    %681 = vmatpush1.bf16.msra.mxu0 0
    %682 = vmatprep.subr.bf16.mxu0 0
    %683 = vmatpush1.bf16.msra.mxu0 0
    %684 = vmatprep.subr.bf16.mxu0 0
    %685 = vmatpush1.bf16.msra.mxu0 %v668
    %686 = vmatprep.subr.bf16.mxu0 0
    %687 = vmatpush2.bf16.msra.mxu0 0
    %688 = vmatprep.subr.bf16.mxu0 0
    %689 = vmatpush2.bf16.msra.mxu0 0
    %690 = vmatprep.subr.bf16.mxu0 0
    %691 = vmatpush2.bf16.msra.mxu0 0
    %692 = vmatprep.subr.bf16.mxu0 0
    %693 = vmatpush2.bf16.msra.mxu0 0
    %694 = vmatprep.subr.bf16.mxu0 0
    %695 = vmatpush2.bf16.msra.mxu0 0
    %696 = vmatprep.subr.bf16.mxu0 0
    %697 = vmatpush2.bf16.msra.mxu0 0
    %698 = vmatprep.subr.bf16.mxu0 0
    %699 = vmatpush2.bf16.msra.mxu0 0
    %700 = vmatprep.subr.bf16.mxu0 0
    %701 = vmatpush2.bf16.msra.mxu0 0
    %702 = vmatprep.mubr.bf16.mxu0 0
    %703 = vmatmul.mubr.bf16.gmra.mxu0 %v665
    %v704 = vpop.f32.mrf.mxu0
    %v705 = vadd.f32 0.0, %v704
    %v706 = vpop.f32.mrf.mxu0
    %v707 = vpop.f32.mrf.mxu0
    %v708 = vadd.f32 0.0, %v707
    %v709 = vpop.f32.mrf.mxu0
    %710 = vdwg.mxu0
    %v712 = vsel %vm220, %v437, 0
    %v715 = vsel %vm345, %v438, 0
    %717 = vmatprep.subr.bf16.mxu0 0
    %718 = vmatpush1.bf16.msra.mxu0 0
    %719 = vmatprep.subr.bf16.mxu0 0
    %720 = vmatpush1.bf16.msra.mxu0 0
    %721 = vmatprep.subr.bf16.mxu0 0
    %722 = vmatpush1.bf16.msra.mxu0 0
    %723 = vmatprep.subr.bf16.mxu0 0
    %724 = vmatpush1.bf16.msra.mxu0 0
    %725 = vmatprep.subr.bf16.mxu0 0
    %726 = vmatpush1.bf16.msra.mxu0 0
    %727 = vmatprep.subr.bf16.mxu0 0
    %728 = vmatpush1.bf16.msra.mxu0 0
    %729 = vmatprep.subr.bf16.mxu0 0
    %730 = vmatpush1.bf16.msra.mxu0 0
    %731 = vmatprep.subr.bf16.mxu0 0
    %732 = vmatpush1.bf16.msra.mxu0 %v715
    %733 = vmatprep.subr.bf16.mxu0 0
    %734 = vmatpush2.bf16.msra.mxu0 0
    %735 = vmatprep.subr.bf16.mxu0 0
    %736 = vmatpush2.bf16.msra.mxu0 0
    %737 = vmatprep.subr.bf16.mxu0 0
    %738 = vmatpush2.bf16.msra.mxu0 0
    %739 = vmatprep.subr.bf16.mxu0 0
    %740 = vmatpush2.bf16.msra.mxu0 0
    %741 = vmatprep.subr.bf16.mxu0 0
    %742 = vmatpush2.bf16.msra.mxu0 0
    %743 = vmatprep.subr.bf16.mxu0 0
    %744 = vmatpush2.bf16.msra.mxu0 0
    %745 = vmatprep.subr.bf16.mxu0 0
    %746 = vmatpush2.bf16.msra.mxu0 0
    %747 = vmatprep.subr.bf16.mxu0 0
    %748 = vmatpush2.bf16.msra.mxu0 0
    %749 = vmatprep.mubr.bf16.mxu0 0
    %750 = vmatmul.mubr.bf16.gmra.mxu0 %v712
    %v751 = vpop.f32.mrf.mxu0
    %v752 = vadd.f32 %v705, %v751
    %v753 = vpop.f32.mrf.mxu0
    %v754 = vpop.f32.mrf.mxu0
    %v755 = vadd.f32 %v708, %v754
    %v756 = vpop.f32.mrf.mxu0
    %757 = vdwg.mxu0
    %758 = vrot.lane.b32.xlu0 %v213, 112
    %v759 = vpop.permute.xlu0 %758
    %760 = vrot.lane.b32.xlu0 %v215, 80
    %v761 = vpop.permute.xlu0 %760
    %v763 = vsel %vm220, %v759, 0
    %v766 = vsel %vm220, %v761, 0
    %768 = vmatprep.subr.bf16.mxu0 0
    %769 = vmatpush1.bf16.xpose.msra.mxu0 0
    %770 = vmatprep.subr.bf16.mxu0 0
    %771 = vmatpush1.bf16.xpose.msra.mxu0 0
    %772 = vmatprep.subr.bf16.mxu0 0
    %773 = vmatpush1.bf16.xpose.msra.mxu0 0
    %774 = vmatprep.subr.bf16.mxu0 0
    %775 = vmatpush1.bf16.xpose.msra.mxu0 0
    %776 = vmatprep.subr.bf16.mxu0 0
    %777 = vmatpush1.bf16.xpose.msra.mxu0 0
    %778 = vmatprep.subr.bf16.mxu0 0
    %779 = vmatpush1.bf16.xpose.msra.mxu0 0
    %780 = vmatprep.subr.bf16.mxu0 0
    %781 = vmatpush1.bf16.xpose.msra.mxu0 0
    %782 = vmatprep.subr.bf16.mxu0 0
    %783 = vmatpush1.bf16.xpose.msra.mxu0 %v766
    %784 = vmatprep.subr.bf16.mxu0 0
    %785 = vmatpush2.bf16.xpose.msra.mxu0 0
    %786 = vmatprep.subr.bf16.mxu0 0
    %787 = vmatpush2.bf16.xpose.msra.mxu0 0
    %788 = vmatprep.subr.bf16.mxu0 0
    %789 = vmatpush2.bf16.xpose.msra.mxu0 0
    %790 = vmatprep.subr.bf16.mxu0 0
    %791 = vmatpush2.bf16.xpose.msra.mxu0 0
    %792 = vmatprep.subr.bf16.mxu0 0
    %793 = vmatpush2.bf16.xpose.msra.mxu0 0
    %794 = vmatprep.subr.bf16.mxu0 0
    %795 = vmatpush2.bf16.xpose.msra.mxu0 0
    %796 = vmatprep.subr.bf16.mxu0 0
    %797 = vmatpush2.bf16.xpose.msra.mxu0 0
    %798 = vmatprep.subr.bf16.mxu0 0
    %799 = vmatpush2.bf16.xpose.msra.mxu0 0
    %800 = vmatprep.mubr.bf16.mxu0 0
    %801 = vmatmul.mubr.bf16.gmra.mxu0 %v763
    %v802 = vpop.f32.mrf.mxu0
    %v803 = vadd.f32 0.0, %v802
    %v804 = vpop.f32.mrf.mxu0
    %v805 = vpop.f32.mrf.mxu0
    %v806 = vpop.f32.mrf.mxu0
    %807 = vdwg.mxu0
    %808 = vrot.lane.b32.xlu0 %v214, 112
    %v809 = vpop.permute.xlu0 %808
    %810 = vrot.lane.b32.xlu0 %v216, 80
    %v811 = vpop.permute.xlu0 %810
    %v813 = vsel %vm220, %v809, 0
    %v816 = vsel %vm220, %v811, 0
    %818 = vmatprep.subr.bf16.mxu0 0
    %819 = vmatpush1.bf16.xpose.msra.mxu0 0
    %820 = vmatprep.subr.bf16.mxu0 0
    %821 = vmatpush1.bf16.xpose.msra.mxu0 0
    %822 = vmatprep.subr.bf16.mxu0 0
    %823 = vmatpush1.bf16.xpose.msra.mxu0 0
    %824 = vmatprep.subr.bf16.mxu0 0
    %825 = vmatpush1.bf16.xpose.msra.mxu0 0
    %826 = vmatprep.subr.bf16.mxu0 0
    %827 = vmatpush1.bf16.xpose.msra.mxu0 0
    %828 = vmatprep.subr.bf16.mxu0 0
    %829 = vmatpush1.bf16.xpose.msra.mxu0 0
    %830 = vmatprep.subr.bf16.mxu0 0
    %831 = vmatpush1.bf16.xpose.msra.mxu0 0
    %832 = vmatprep.subr.bf16.mxu0 0
    %833 = vmatpush1.bf16.xpose.msra.mxu0 %v816
    %834 = vmatprep.subr.bf16.mxu0 0
    %835 = vmatpush2.bf16.xpose.msra.mxu0 0
    %836 = vmatprep.subr.bf16.mxu0 0
    %837 = vmatpush2.bf16.xpose.msra.mxu0 0
    %838 = vmatprep.subr.bf16.mxu0 0
    %839 = vmatpush2.bf16.xpose.msra.mxu0 0
    %840 = vmatprep.subr.bf16.mxu0 0
    %841 = vmatpush2.bf16.xpose.msra.mxu0 0
    %842 = vmatprep.subr.bf16.mxu0 0
    %843 = vmatpush2.bf16.xpose.msra.mxu0 0
    %844 = vmatprep.subr.bf16.mxu0 0
    %845 = vmatpush2.bf16.xpose.msra.mxu0 0
    %846 = vmatprep.subr.bf16.mxu0 0
    %847 = vmatpush2.bf16.xpose.msra.mxu0 0
    %848 = vmatprep.subr.bf16.mxu0 0
    %849 = vmatpush2.bf16.xpose.msra.mxu0 0
    %850 = vmatprep.mubr.bf16.mxu0 0
    %851 = vmatmul.mubr.bf16.gmra.mxu0 %v813
    %v852 = vpop.f32.mrf.mxu0
    %v853 = vadd.f32 0.0, %v852
    %v854 = vpop.f32.mrf.mxu0
    %v855 = vpop.f32.mrf.mxu0
    %v856 = vpop.f32.mrf.mxu0
    %857 = vdwg.mxu0
    %v858 = vsel %vm220, %v803, -inf
    %859 = vmax.xlane.f32.xlu0 %v858
    %v860 = vpop.xlane.xlu0 %859
    %v861 = vsel %vm220, %v853, -inf
    %862 = vmax.xlane.f32.xlu0 %v861
    %v863 = vpop.xlane.xlu0 %862
    %v864 = vsub.f32 %v803, %v860
    %v865 = vsub.f32 %v853, %v863
    %v866 = vmul.f32 %v864, 1.442695
    %v867 = vpow.pop %v866
    %v868 = vmul.f32 %v865, 1.442695
    %v869 = vpow.pop %v868
    %v870 = vsel %vm220, %v867, 0.0
    %871 = vadd.xlane.f32.xlu0 %v870
    %v872 = vpop.xlane.xlu0 %871
    %v873 = vsel %vm220, %v869, 0.0
    %874 = vadd.xlane.f32.xlu0 %v873
    %v875 = vpop.xlane.xlu0 %874
    %v876 = vrcp.pop %v872
    %v877 = vrcp.pop %v875
    %v878 = vmul.f32 %v867, %v876
    %v879 = vmul.f32 %v869, %v877
    %v880 = vpack.c.bf16 %v878, %v878
    %v881 = vpack.c.bf16 %v879, %v879
    %882 = vrot.lane.b32.xlu0 %v215, 48
    %v883 = vpop.permute.xlu0 %882
    %v885 = vsel %vm220, %v880, 0
    %v888 = vsel %vm345, %v883, 0
    %890 = vmatprep.subr.bf16.mxu0 0
    %891 = vmatpush1.bf16.msra.mxu0 0
    %892 = vmatprep.subr.bf16.mxu0 0
    %893 = vmatpush1.bf16.msra.mxu0 0
    %894 = vmatprep.subr.bf16.mxu0 0
    %895 = vmatpush1.bf16.msra.mxu0 0
    %896 = vmatprep.subr.bf16.mxu0 0
    %897 = vmatpush1.bf16.msra.mxu0 0
    %898 = vmatprep.subr.bf16.mxu0 0
    %899 = vmatpush1.bf16.msra.mxu0 0
    %900 = vmatprep.subr.bf16.mxu0 0
    %901 = vmatpush1.bf16.msra.mxu0 0
    %902 = vmatprep.subr.bf16.mxu0 0
    %903 = vmatpush1.bf16.msra.mxu0 0
    %904 = vmatprep.subr.bf16.mxu0 0
    %905 = vmatpush1.bf16.msra.mxu0 %v888
    %906 = vmatprep.subr.bf16.mxu0 0
    %907 = vmatpush2.bf16.msra.mxu0 0
    %908 = vmatprep.subr.bf16.mxu0 0
    %909 = vmatpush2.bf16.msra.mxu0 0
    %910 = vmatprep.subr.bf16.mxu0 0
    %911 = vmatpush2.bf16.msra.mxu0 0
    %912 = vmatprep.subr.bf16.mxu0 0
    %913 = vmatpush2.bf16.msra.mxu0 0
    %914 = vmatprep.subr.bf16.mxu0 0
    %915 = vmatpush2.bf16.msra.mxu0 0
    %916 = vmatprep.subr.bf16.mxu0 0
    %917 = vmatpush2.bf16.msra.mxu0 0
    %918 = vmatprep.subr.bf16.mxu0 0
    %919 = vmatpush2.bf16.msra.mxu0 0
    %920 = vmatprep.subr.bf16.mxu0 0
    %921 = vmatpush2.bf16.msra.mxu0 0
    %922 = vmatprep.mubr.bf16.mxu0 0
    %923 = vmatmul.mubr.bf16.gmra.mxu0 %v885
    %v924 = vpop.f32.mrf.mxu0
    %v925 = vadd.f32 0.0, %v924
    %v926 = vpop.f32.mrf.mxu0
    %v927 = vpop.f32.mrf.mxu0
    %v928 = vpop.f32.mrf.mxu0
    %929 = vdwg.mxu0
    %930 = vrot.lane.b32.xlu0 %v216, 48
    %v931 = vpop.permute.xlu0 %930
    %v933 = vsel %vm220, %v881, 0
    %v936 = vsel %vm345, %v931, 0
    %938 = vmatprep.subr.bf16.mxu0 0
    %939 = vmatpush1.bf16.msra.mxu0 0
    %940 = vmatprep.subr.bf16.mxu0 0
    %941 = vmatpush1.bf16.msra.mxu0 0
    %942 = vmatprep.subr.bf16.mxu0 0
    %943 = vmatpush1.bf16.msra.mxu0 0
    %944 = vmatprep.subr.bf16.mxu0 0
    %945 = vmatpush1.bf16.msra.mxu0 0
    %946 = vmatprep.subr.bf16.mxu0 0
    %947 = vmatpush1.bf16.msra.mxu0 0
    %948 = vmatprep.subr.bf16.mxu0 0
    %949 = vmatpush1.bf16.msra.mxu0 0
    %950 = vmatprep.subr.bf16.mxu0 0
    %951 = vmatpush1.bf16.msra.mxu0 0
    %952 = vmatprep.subr.bf16.mxu0 0
    %953 = vmatpush1.bf16.msra.mxu0 %v936
    %954 = vmatprep.subr.bf16.mxu0 0
    %955 = vmatpush2.bf16.msra.mxu0 0
    %956 = vmatprep.subr.bf16.mxu0 0
    %957 = vmatpush2.bf16.msra.mxu0 0
    %958 = vmatprep.subr.bf16.mxu0 0
    %959 = vmatpush2.bf16.msra.mxu0 0
    %960 = vmatprep.subr.bf16.mxu0 0
    %961 = vmatpush2.bf16.msra.mxu0 0
    %962 = vmatprep.subr.bf16.mxu0 0
    %963 = vmatpush2.bf16.msra.mxu0 0
    %964 = vmatprep.subr.bf16.mxu0 0
    %965 = vmatpush2.bf16.msra.mxu0 0
    %966 = vmatprep.subr.bf16.mxu0 0
    %967 = vmatpush2.bf16.msra.mxu0 0
    %968 = vmatprep.subr.bf16.mxu0 0
    %969 = vmatpush2.bf16.msra.mxu0 0
    %970 = vmatprep.mubr.bf16.mxu0 0
    %971 = vmatmul.mubr.bf16.gmra.mxu0 %v933
    %v972 = vpop.f32.mrf.mxu0
    %v973 = vadd.f32 0.0, %v972
    %v974 = vpop.f32.mrf.mxu0
    %v975 = vpop.f32.mrf.mxu0
    %v976 = vpop.f32.mrf.mxu0
    %977 = vdwg.mxu0
    %v978 = vpack.c.bf16 %v973, %v925
    %s979 = scalar_lea.vmem %s5, 8
    %v980 = vld [vmem:[%s979] sm:$0xf]
    %v982 = vsel %vm220, %v978, 0
    %v985 = vsel %vm345, %v980, 0
    %987 = vmatprep.subr.bf16.mxu0 0
    %988 = vmatpush1.bf16.msra.mxu0 0
    %989 = vmatprep.subr.bf16.mxu0 0
    %990 = vmatpush1.bf16.msra.mxu0 0
    %991 = vmatprep.subr.bf16.mxu0 0
    %992 = vmatpush1.bf16.msra.mxu0 0
    %993 = vmatprep.subr.bf16.mxu0 0
    %994 = vmatpush1.bf16.msra.mxu0 0
    %995 = vmatprep.subr.bf16.mxu0 0
    %996 = vmatpush1.bf16.msra.mxu0 0
    %997 = vmatprep.subr.bf16.mxu0 0
    %998 = vmatpush1.bf16.msra.mxu0 0
    %999 = vmatprep.subr.bf16.mxu0 0
    %1000 = vmatpush1.bf16.msra.mxu0 0
    %1001 = vmatprep.subr.bf16.mxu0 0
    %1002 = vmatpush1.bf16.msra.mxu0 %v985
    %1003 = vmatprep.subr.bf16.mxu0 0
    %1004 = vmatpush2.bf16.msra.mxu0 0
    %1005 = vmatprep.subr.bf16.mxu0 0
    %1006 = vmatpush2.bf16.msra.mxu0 0
    %1007 = vmatprep.subr.bf16.mxu0 0
    %1008 = vmatpush2.bf16.msra.mxu0 0
    %1009 = vmatprep.subr.bf16.mxu0 0
    %1010 = vmatpush2.bf16.msra.mxu0 0
    %1011 = vmatprep.subr.bf16.mxu0 0
    %1012 = vmatpush2.bf16.msra.mxu0 0
    %1013 = vmatprep.subr.bf16.mxu0 0
    %1014 = vmatpush2.bf16.msra.mxu0 0
    %1015 = vmatprep.subr.bf16.mxu0 0
    %1016 = vmatpush2.bf16.msra.mxu0 0
    %1017 = vmatprep.subr.bf16.mxu0 0
    %1018 = vmatpush2.bf16.msra.mxu0 0
    %1019 = vmatprep.mubr.bf16.mxu0 0
    %1020 = vmatmul.mubr.bf16.gmra.mxu0 %v982
    %v1021 = vpop.f32.mrf.mxu0
    %v1022 = vadd.f32 0.0, %v1021
    %v1023 = vpop.f32.mrf.mxu0
    %v1024 = vpop.f32.mrf.mxu0
    %v1025 = vadd.f32 0.0, %v1024
    %v1026 = vpop.f32.mrf.mxu0
    %1027 = vdwg.mxu0
    %v1028 = vadd.f32 %v752, %v1022
    %v1029 = vadd.f32 %v755, %v1025
    %1030 = vrot.lane.b32.xlu0 %v213, 104
    %v1031 = vpop.permute.xlu0 %1030
    %1032 = vrot.lane.b32.xlu0 %v215, 72
    %v1033 = vpop.permute.xlu0 %1032
    %v1035 = vsel %vm220, %v1031, 0
    %v1038 = vsel %vm220, %v1033, 0
    %1040 = vmatprep.subr.bf16.mxu0 0
    %1041 = vmatpush1.bf16.xpose.msra.mxu0 0
    %1042 = vmatprep.subr.bf16.mxu0 0
    %1043 = vmatpush1.bf16.xpose.msra.mxu0 0
    %1044 = vmatprep.subr.bf16.mxu0 0
    %1045 = vmatpush1.bf16.xpose.msra.mxu0 0
    %1046 = vmatprep.subr.bf16.mxu0 0
    %1047 = vmatpush1.bf16.xpose.msra.mxu0 0
    %1048 = vmatprep.subr.bf16.mxu0 0
    %1049 = vmatpush1.bf16.xpose.msra.mxu0 0
    %1050 = vmatprep.subr.bf16.mxu0 0
    %1051 = vmatpush1.bf16.xpose.msra.mxu0 0
    %1052 = vmatprep.subr.bf16.mxu0 0
    %1053 = vmatpush1.bf16.xpose.msra.mxu0 0
    %1054 = vmatprep.subr.bf16.mxu0 0
    %1055 = vmatpush1.bf16.xpose.msra.mxu0 %v1038
    %1056 = vmatprep.subr.bf16.mxu0 0
    %1057 = vmatpush2.bf16.xpose.msra.mxu0 0
    %1058 = vmatprep.subr.bf16.mxu0 0
    %1059 = vmatpush2.bf16.xpose.msra.mxu0 0
    %1060 = vmatprep.subr.bf16.mxu0 0
    %1061 = vmatpush2.bf16.xpose.msra.mxu0 0
    %1062 = vmatprep.subr.bf16.mxu0 0
    %1063 = vmatpush2.bf16.xpose.msra.mxu0 0
    %1064 = vmatprep.subr.bf16.mxu0 0
    %1065 = vmatpush2.bf16.xpose.msra.mxu0 0
    %1066 = vmatprep.subr.bf16.mxu0 0
    %1067 = vmatpush2.bf16.xpose.msra.mxu0 0
    %1068 = vmatprep.subr.bf16.mxu0 0
    %1069 = vmatpush2.bf16.xpose.msra.mxu0 0
    %1070 = vmatprep.subr.bf16.mxu0 0
    %1071 = vmatpush2.bf16.xpose.msra.mxu0 0
    %1072 = vmatprep.mubr.bf16.mxu0 0
    %1073 = vmatmul.mubr.bf16.gmra.mxu0 %v1035
    %v1074 = vpop.f32.mrf.mxu0
    %v1075 = vadd.f32 0.0, %v1074
    %v1076 = vpop.f32.mrf.mxu0
    %v1077 = vpop.f32.mrf.mxu0
    %v1078 = vpop.f32.mrf.mxu0
    %1079 = vdwg.mxu0
    %1080 = vrot.lane.b32.xlu0 %v214, 104
    %v1081 = vpop.permute.xlu0 %1080
    %1082 = vrot.lane.b32.xlu0 %v216, 72
    %v1083 = vpop.permute.xlu0 %1082
    %v1085 = vsel %vm220, %v1081, 0
    %v1088 = vsel %vm220, %v1083, 0
    %1090 = vmatprep.subr.bf16.mxu0 0
    %1091 = vmatpush1.bf16.xpose.msra.mxu0 0
    %1092 = vmatprep.subr.bf16.mxu0 0
    %1093 = vmatpush1.bf16.xpose.msra.mxu0 0
    %1094 = vmatprep.subr.bf16.mxu0 0
    %1095 = vmatpush1.bf16.xpose.msra.mxu0 0
    %1096 = vmatprep.subr.bf16.mxu0 0
    %1097 = vmatpush1.bf16.xpose.msra.mxu0 0
    %1098 = vmatprep.subr.bf16.mxu0 0
    %1099 = vmatpush1.bf16.xpose.msra.mxu0 0
    %1100 = vmatprep.subr.bf16.mxu0 0
    %1101 = vmatpush1.bf16.xpose.msra.mxu0 0
    %1102 = vmatprep.subr.bf16.mxu0 0
    %1103 = vmatpush1.bf16.xpose.msra.mxu0 0
    %1104 = vmatprep.subr.bf16.mxu0 0
    %1105 = vmatpush1.bf16.xpose.msra.mxu0 %v1088
    %1106 = vmatprep.subr.bf16.mxu0 0
    %1107 = vmatpush2.bf16.xpose.msra.mxu0 0
    %1108 = vmatprep.subr.bf16.mxu0 0
    %1109 = vmatpush2.bf16.xpose.msra.mxu0 0
    %1110 = vmatprep.subr.bf16.mxu0 0
    %1111 = vmatpush2.bf16.xpose.msra.mxu0 0
    %1112 = vmatprep.subr.bf16.mxu0 0
    %1113 = vmatpush2.bf16.xpose.msra.mxu0 0
    %1114 = vmatprep.subr.bf16.mxu0 0
    %1115 = vmatpush2.bf16.xpose.msra.mxu0 0
    %1116 = vmatprep.subr.bf16.mxu0 0
    %1117 = vmatpush2.bf16.xpose.msra.mxu0 0
    %1118 = vmatprep.subr.bf16.mxu0 0
    %1119 = vmatpush2.bf16.xpose.msra.mxu0 0
    %1120 = vmatprep.subr.bf16.mxu0 0
    %1121 = vmatpush2.bf16.xpose.msra.mxu0 0
    %1122 = vmatprep.mubr.bf16.mxu0 0
    %1123 = vmatmul.mubr.bf16.gmra.mxu0 %v1085
    %v1124 = vpop.f32.mrf.mxu0
    %v1125 = vadd.f32 0.0, %v1124
    %v1126 = vpop.f32.mrf.mxu0
    %v1127 = vpop.f32.mrf.mxu0
    %v1128 = vpop.f32.mrf.mxu0
    %1129 = vdwg.mxu0
    %v1130 = vsel %vm220, %v1075, -inf
    %1131 = vmax.xlane.f32.xlu0 %v1130
    %v1132 = vpop.xlane.xlu0 %1131
    %v1133 = vsel %vm220, %v1125, -inf
    %1134 = vmax.xlane.f32.xlu0 %v1133
    %v1135 = vpop.xlane.xlu0 %1134
    %v1136 = vsub.f32 %v1075, %v1132
    %v1137 = vsub.f32 %v1125, %v1135
    %v1138 = vmul.f32 %v1136, 1.442695
    %v1139 = vpow.pop %v1138
    %v1140 = vmul.f32 %v1137, 1.442695
    %v1141 = vpow.pop %v1140
    %v1142 = vsel %vm220, %v1139, 0.0
    %1143 = vadd.xlane.f32.xlu0 %v1142
    %v1144 = vpop.xlane.xlu0 %1143
    %v1145 = vsel %vm220, %v1141, 0.0
    %1146 = vadd.xlane.f32.xlu0 %v1145
    %v1147 = vpop.xlane.xlu0 %1146
    %v1148 = vrcp.pop %v1144
    %v1149 = vrcp.pop %v1147
    %v1150 = vmul.f32 %v1139, %v1148
    %v1151 = vmul.f32 %v1141, %v1149
    %v1152 = vpack.c.bf16 %v1150, %v1150
    %v1153 = vpack.c.bf16 %v1151, %v1151
    %1154 = vrot.lane.b32.xlu0 %v215, 40
    %v1155 = vpop.permute.xlu0 %1154
    %v1157 = vsel %vm220, %v1152, 0
    %v1160 = vsel %vm345, %v1155, 0
    %1162 = vmatprep.subr.bf16.mxu0 0
    %1163 = vmatpush1.bf16.msra.mxu0 0
    %1164 = vmatprep.subr.bf16.mxu0 0
    %1165 = vmatpush1.bf16.msra.mxu0 0
    %1166 = vmatprep.subr.bf16.mxu0 0
    %1167 = vmatpush1.bf16.msra.mxu0 0
    %1168 = vmatprep.subr.bf16.mxu0 0
    %1169 = vmatpush1.bf16.msra.mxu0 0
    %1170 = vmatprep.subr.bf16.mxu0 0
    %1171 = vmatpush1.bf16.msra.mxu0 0
    %1172 = vmatprep.subr.bf16.mxu0 0
    %1173 = vmatpush1.bf16.msra.mxu0 0
    %1174 = vmatprep.subr.bf16.mxu0 0
    %1175 = vmatpush1.bf16.msra.mxu0 0
    %1176 = vmatprep.subr.bf16.mxu0 0
    %1177 = vmatpush1.bf16.msra.mxu0 %v1160
    %1178 = vmatprep.subr.bf16.mxu0 0
    %1179 = vmatpush2.bf16.msra.mxu0 0
    %1180 = vmatprep.subr.bf16.mxu0 0
    %1181 = vmatpush2.bf16.msra.mxu0 0
    %1182 = vmatprep.subr.bf16.mxu0 0
    %1183 = vmatpush2.bf16.msra.mxu0 0
    %1184 = vmatprep.subr.bf16.mxu0 0
    %1185 = vmatpush2.bf16.msra.mxu0 0
    %1186 = vmatprep.subr.bf16.mxu0 0
    %1187 = vmatpush2.bf16.msra.mxu0 0
    %1188 = vmatprep.subr.bf16.mxu0 0
    %1189 = vmatpush2.bf16.msra.mxu0 0
    %1190 = vmatprep.subr.bf16.mxu0 0
    %1191 = vmatpush2.bf16.msra.mxu0 0
    %1192 = vmatprep.subr.bf16.mxu0 0
    %1193 = vmatpush2.bf16.msra.mxu0 0
    %1194 = vmatprep.mubr.bf16.mxu0 0
    %1195 = vmatmul.mubr.bf16.gmra.mxu0 %v1157
    %v1196 = vpop.f32.mrf.mxu0
    %v1197 = vadd.f32 0.0, %v1196
    %v1198 = vpop.f32.mrf.mxu0
    %v1199 = vpop.f32.mrf.mxu0
    %v1200 = vpop.f32.mrf.mxu0
    %1201 = vdwg.mxu0
    %1202 = vrot.lane.b32.xlu0 %v216, 40
    %v1203 = vpop.permute.xlu0 %1202
    %v1205 = vsel %vm220, %v1153, 0
    %v1208 = vsel %vm345, %v1203, 0
    %1210 = vmatprep.subr.bf16.mxu0 0
    %1211 = vmatpush1.bf16.msra.mxu0 0
    %1212 = vmatprep.subr.bf16.mxu0 0
    %1213 = vmatpush1.bf16.msra.mxu0 0
    %1214 = vmatprep.subr.bf16.mxu0 0
    %1215 = vmatpush1.bf16.msra.mxu0 0
    %1216 = vmatprep.subr.bf16.mxu0 0
    %1217 = vmatpush1.bf16.msra.mxu0 0
    %1218 = vmatprep.subr.bf16.mxu0 0
    %1219 = vmatpush1.bf16.msra.mxu0 0
    %1220 = vmatprep.subr.bf16.mxu0 0
    %1221 = vmatpush1.bf16.msra.mxu0 0
    %1222 = vmatprep.subr.bf16.mxu0 0
    %1223 = vmatpush1.bf16.msra.mxu0 0
    %1224 = vmatprep.subr.bf16.mxu0 0
    %1225 = vmatpush1.bf16.msra.mxu0 %v1208
    %1226 = vmatprep.subr.bf16.mxu0 0
    %1227 = vmatpush2.bf16.msra.mxu0 0
    %1228 = vmatprep.subr.bf16.mxu0 0
    %1229 = vmatpush2.bf16.msra.mxu0 0
    %1230 = vmatprep.subr.bf16.mxu0 0
    %1231 = vmatpush2.bf16.msra.mxu0 0
    %1232 = vmatprep.subr.bf16.mxu0 0
    %1233 = vmatpush2.bf16.msra.mxu0 0
    %1234 = vmatprep.subr.bf16.mxu0 0
    %1235 = vmatpush2.bf16.msra.mxu0 0
    %1236 = vmatprep.subr.bf16.mxu0 0
    %1237 = vmatpush2.bf16.msra.mxu0 0
    %1238 = vmatprep.subr.bf16.mxu0 0
    %1239 = vmatpush2.bf16.msra.mxu0 0
    %1240 = vmatprep.subr.bf16.mxu0 0
    %1241 = vmatpush2.bf16.msra.mxu0 0
    %1242 = vmatprep.mubr.bf16.mxu0 0
    %1243 = vmatmul.mubr.bf16.gmra.mxu0 %v1205
    %v1244 = vpop.f32.mrf.mxu0
    %v1245 = vadd.f32 0.0, %v1244
    %v1246 = vpop.f32.mrf.mxu0
    %v1247 = vpop.f32.mrf.mxu0
    %v1248 = vpop.f32.mrf.mxu0
    %1249 = vdwg.mxu0
    %v1250 = vpack.c.bf16 %v1245, %v1197
    %s1251 = scalar_lea.vmem %s5, 12
    %v1252 = vld [vmem:[%s1251] sm:$0xf]
    %v1254 = vsel %vm220, %v1250, 0
    %v1257 = vsel %vm345, %v1252, 0
    %1259 = vmatprep.subr.bf16.mxu0 0
    %1260 = vmatpush1.bf16.msra.mxu0 0
    %1261 = vmatprep.subr.bf16.mxu0 0
    %1262 = vmatpush1.bf16.msra.mxu0 0
    %1263 = vmatprep.subr.bf16.mxu0 0
    %1264 = vmatpush1.bf16.msra.mxu0 0
    %1265 = vmatprep.subr.bf16.mxu0 0
    %1266 = vmatpush1.bf16.msra.mxu0 0
    %1267 = vmatprep.subr.bf16.mxu0 0
    %1268 = vmatpush1.bf16.msra.mxu0 0
    %1269 = vmatprep.subr.bf16.mxu0 0
    %1270 = vmatpush1.bf16.msra.mxu0 0
    %1271 = vmatprep.subr.bf16.mxu0 0
    %1272 = vmatpush1.bf16.msra.mxu0 0
    %1273 = vmatprep.subr.bf16.mxu0 0
    %1274 = vmatpush1.bf16.msra.mxu0 %v1257
    %1275 = vmatprep.subr.bf16.mxu0 0
    %1276 = vmatpush2.bf16.msra.mxu0 0
    %1277 = vmatprep.subr.bf16.mxu0 0
    %1278 = vmatpush2.bf16.msra.mxu0 0
    %1279 = vmatprep.subr.bf16.mxu0 0
    %1280 = vmatpush2.bf16.msra.mxu0 0
    %1281 = vmatprep.subr.bf16.mxu0 0
    %1282 = vmatpush2.bf16.msra.mxu0 0
    %1283 = vmatprep.subr.bf16.mxu0 0
    %1284 = vmatpush2.bf16.msra.mxu0 0
    %1285 = vmatprep.subr.bf16.mxu0 0
    %1286 = vmatpush2.bf16.msra.mxu0 0
    %1287 = vmatprep.subr.bf16.mxu0 0
    %1288 = vmatpush2.bf16.msra.mxu0 0
    %1289 = vmatprep.subr.bf16.mxu0 0
    %1290 = vmatpush2.bf16.msra.mxu0 0
    %1291 = vmatprep.mubr.bf16.mxu0 0
    %1292 = vmatmul.mubr.bf16.gmra.mxu0 %v1254
    %v1293 = vpop.f32.mrf.mxu0
    %v1294 = vadd.f32 0.0, %v1293
    %v1295 = vpop.f32.mrf.mxu0
    %v1296 = vpop.f32.mrf.mxu0
    %v1297 = vadd.f32 0.0, %v1296
    %v1298 = vpop.f32.mrf.mxu0
    %1299 = vdwg.mxu0
    %v1300 = vadd.f32 %v1028, %v1294
    %v1301 = vadd.f32 %v1029, %v1297
    %v1302 = vadd.f32 %v95, %v1300
    %v1303 = vadd.f32 %v96, %v1301
    %v1304 = vld [vmem:[%s6] sm:$0x1]
    %v1306 = vlaneseq
    %v1307 = vshrl.u32 %v1306, 7
    %v1308 = vsub.s32 0, %v1307
    %v1309 = vrot.slane %v1304, %v1308
    %v1311 = vadd.f32 %v1302, %v1309
    %v1312 = vadd.f32 %v1303, %v1309
    %v1313 = vld [vmem:[#allocation2] sm:$0x1]
    %v1314 = vld [vmem:[#allocation5] sm:$0x1]
    %v1315 = vsel %vm99, %v1311, 0.0
    %1316 = vadd.xlane.f32.xlu0 %v1315
    %v1317 = vpop.xlane.xlu0 %1316
    %v1318 = vsel %vm99, %v1312, 0.0
    %1319 = vadd.xlane.f32.xlu0 %v1318
    %v1320 = vpop.xlane.xlu0 %1319
    %v1321 = vmul.f32 %v1317, %v106
    %v1322 = vmul.f32 %v1320, %v106
    %v1323 = vsub.f32 %v1311, %v1321
    %v1324 = vsub.f32 %v1312, %v1322
    %v1325 = vmul.f32 %v1323, %v1323
    %v1326 = vmul.f32 %v1324, %v1324
    %v1327 = vsel %vm99, %v1325, 0.0
    %1328 = vadd.xlane.f32.xlu0 %v1327
    %v1329 = vpop.xlane.xlu0 %1328
    %v1330 = vsel %vm99, %v1326, 0.0
    %1331 = vadd.xlane.f32.xlu0 %v1330
    %v1332 = vpop.xlane.xlu0 %1331
    %v1333 = vmul.f32 %v1329, %v106
    %v1334 = vmul.f32 %v1332, %v106
    %v1335 = vadd.f32 %v1333, 1e-05
    %v1336 = vadd.f32 %v1334, 1e-05
    %v1337 = vrsqrt.pop %v1335
    %v1338 = vrsqrt.pop %v1336
    %v1339 = vmul.f32 %v1323, %v1337
    %v1340 = vmul.f32 %v1324, %v1338
    %v1342 = vlaneseq
    %v1343 = vshrl.u32 %v1342, 7
    %v1344 = vsub.s32 0, %v1343
    %v1345 = vrot.slane %v1313, %v1344
    %v1347 = vmul.f32 %v1339, %v1345
    %v1348 = vmul.f32 %v1340, %v1345
    %v1350 = vlaneseq
    %v1351 = vshrl.u32 %v1350, 7
    %v1352 = vsub.s32 0, %v1351
    %v1353 = vrot.slane %v1314, %v1352
    %v1355 = vadd.f32 %v1347, %v1353
    %v1356 = vadd.f32 %v1348, %v1353
    %v1357 = vpack.c.bf16 %v1356, %v1355
    %v1358 = vld [vmem:[#allocation7] sm:$0xf]
    %v1359 = vld [vmem:[#allocation7 + $0x4] sm:$0xf]
    %v1360 = vld [vmem:[#allocation7 + $0x8] sm:$0xf]
    %v1361 = vld [vmem:[#allocation7 + $0xc] sm:$0xf]
    %v1362 = vld [vmem:[#allocation8] sm:$0x1]
    %v1364 = vlaneseq
    %v1365 = vshrl.u32 %v1364, 7
    %v1366 = vsub.s32 0, %v1365
    %v1367 = vrot.slane %v1362, %v1366
    %v1373 = vunpack.c.l.b16 %v1358
    %v1374 = vunpack.c.l.b16 %v1359
    %v1375 = vunpack.c.l.b16 %v1360
    %v1376 = vunpack.c.l.b16 %v1361
    %v1377 = vpack.c.b16 %v1374, %v1373
    %v1378 = vpack.c.b16 %v1376, %v1375
    %v1382 = vsel %vm99, %v1357, 0
    %1384 = vmatprep.subr.bf16.mxu0 0
    %1385 = vmatpush1.bf16.msra.mxu0 0
    %1386 = vmatprep.subr.bf16.mxu0 0
    %1387 = vmatpush1.bf16.msra.mxu0 0
    %1388 = vmatprep.subr.bf16.mxu0 0
    %1389 = vmatpush1.bf16.msra.mxu0 0
    %1390 = vmatprep.subr.bf16.mxu0 0
    %1391 = vmatpush1.bf16.msra.mxu0 0
    %1392 = vmatprep.subr.bf16.mxu0 0
    %1393 = vmatpush1.bf16.msra.mxu0 0
    %1394 = vmatprep.subr.bf16.mxu0 0
    %1395 = vmatpush1.bf16.msra.mxu0 0
    %1396 = vmatprep.subr.bf16.mxu0 0
    %1397 = vmatpush1.bf16.msra.mxu0 %v1378
    %1398 = vmatprep.subr.bf16.mxu0 0
    %1399 = vmatpush1.bf16.msra.mxu0 %v1377
    %1400 = vmatprep.subr.bf16.mxu0 0
    %1401 = vmatpush2.bf16.msra.mxu0 0
    %1402 = vmatprep.subr.bf16.mxu0 0
    %1403 = vmatpush2.bf16.msra.mxu0 0
    %1404 = vmatprep.subr.bf16.mxu0 0
    %1405 = vmatpush2.bf16.msra.mxu0 0
    %1406 = vmatprep.subr.bf16.mxu0 0
    %1407 = vmatpush2.bf16.msra.mxu0 0
    %1408 = vmatprep.subr.bf16.mxu0 0
    %1409 = vmatpush2.bf16.msra.mxu0 0
    %1410 = vmatprep.subr.bf16.mxu0 0
    %1411 = vmatpush2.bf16.msra.mxu0 0
    %1412 = vmatprep.subr.bf16.mxu0 0
    %1413 = vmatpush2.bf16.msra.mxu0 0
    %1414 = vmatprep.subr.bf16.mxu0 0
    %1415 = vmatpush2.bf16.msra.mxu0 0
    %1416 = vmatprep.mubr.bf16.mxu0 0
    %1417 = vmatmul.mubr.bf16.gmra.mxu0 %v1382
    %v1418 = vpop.f32.mrf.mxu0
    %v1419 = vadd.f32 %v1367, %v1418
    %v1420 = vpop.f32.mrf.mxu0
    %v1421 = vpop.f32.mrf.mxu0
    %v1422 = vadd.f32 %v1367, %v1421
    %v1423 = vpop.f32.mrf.mxu0
    %1424 = vdwg.mxu0
    %v1425 = vmul.f32 %v1419, 0.5
    %v1426 = vmul.f32 %v1422, 0.5
    %v1427 = vmul.f32 %v1419, 0.70710677
    %v1428 = vmul.f32 %v1422, 0.70710677
    %v1429 = verf.f32.pop %v1427
    %v1430 = verf.f32.pop %v1428
    %v1431 = vadd.f32 %v1429, 1.0
    %v1432 = vadd.f32 %v1430, 1.0
    %v1433 = vmul.f32 %v1425, %v1431
    %v1434 = vmul.f32 %v1426, %v1432
    %v1435 = vpack.c.bf16 %v1434, %v1433
    %v1436 = vld [vmem:[%s11] sm:$0xf]
    %v1437 = vld [vmem:[%s11 + $0x4] sm:$0xf]
    %v1438 = vld [vmem:[%s11 + $0x8] sm:$0xf]
    %v1439 = vld [vmem:[%s11 + $0xc] sm:$0xf]
    %v1440 = vld [vmem:[%s11 + $0x10] sm:$0xf]
    %v1441 = vld [vmem:[%s11 + $0x14] sm:$0xf]
    %v1442 = vld [vmem:[%s11 + $0x18] sm:$0xf]
    %v1443 = vld [vmem:[%s11 + $0x1c] sm:$0xf]
    %v1444 = vld [vmem:[%s12] sm:$0x1]
    %v1446 = vlaneseq
    %v1447 = vshrl.u32 %v1446, 7
    %v1448 = vsub.s32 0, %v1447
    %v1449 = vrot.slane %v1444, %v1448
    %v1459 = vunpack.c.l.b16 %v1436
    %v1460 = vunpack.c.l.b16 %v1437
    %v1461 = vunpack.c.l.b16 %v1438
    %v1462 = vunpack.c.l.b16 %v1439
    %v1463 = vunpack.c.l.b16 %v1440
    %v1464 = vunpack.c.l.b16 %v1441
    %v1465 = vunpack.c.l.b16 %v1442
    %v1466 = vunpack.c.l.b16 %v1443
    %v1467 = vpack.c.b16 %v1460, %v1459
    %v1468 = vpack.c.b16 %v1462, %v1461
    %v1469 = vpack.c.b16 %v1464, %v1463
    %v1470 = vpack.c.b16 %v1466, %v1465
    %vm1475 = vcmask 523264
    %v1477 = vsel %vm1475, %v1435, 0
    %1479 = vmatprep.subr.bf16.mxu0 0
    %1480 = vmatpush1.bf16.msra.mxu0 0
    %1481 = vmatprep.subr.bf16.mxu0 0
    %1482 = vmatpush1.bf16.msra.mxu0 0
    %1483 = vmatprep.subr.bf16.mxu0 0
    %1484 = vmatpush1.bf16.msra.mxu0 0
    %1485 = vmatprep.subr.bf16.mxu0 0
    %1486 = vmatpush1.bf16.msra.mxu0 0
    %1487 = vmatprep.subr.bf16.mxu0 0
    %1488 = vmatpush1.bf16.msra.mxu0 %v1470
    %1489 = vmatprep.subr.bf16.mxu0 0
    %1490 = vmatpush1.bf16.msra.mxu0 %v1469
    %1491 = vmatprep.subr.bf16.mxu0 0
    %1492 = vmatpush1.bf16.msra.mxu0 %v1468
    %1493 = vmatprep.subr.bf16.mxu0 0
    %1494 = vmatpush1.bf16.msra.mxu0 %v1467
    %1495 = vmatprep.subr.bf16.mxu0 0
    %1496 = vmatpush2.bf16.msra.mxu0 0
    %1497 = vmatprep.subr.bf16.mxu0 0
    %1498 = vmatpush2.bf16.msra.mxu0 0
    %1499 = vmatprep.subr.bf16.mxu0 0
    %1500 = vmatpush2.bf16.msra.mxu0 0
    %1501 = vmatprep.subr.bf16.mxu0 0
    %1502 = vmatpush2.bf16.msra.mxu0 0
    %1503 = vmatprep.subr.bf16.mxu0 0
    %1504 = vmatpush2.bf16.msra.mxu0 0
    %1505 = vmatprep.subr.bf16.mxu0 0
    %1506 = vmatpush2.bf16.msra.mxu0 0
    %1507 = vmatprep.subr.bf16.mxu0 0
    %1508 = vmatpush2.bf16.msra.mxu0 0
    %1509 = vmatprep.subr.bf16.mxu0 0
    %1510 = vmatpush2.bf16.msra.mxu0 0
    %1511 = vmatprep.mubr.bf16.mxu0 0
    %1512 = vmatmul.mubr.bf16.gmra.mxu0 %v1477
    %v1513 = vpop.f32.mrf.mxu0
    %v1514 = vadd.f32 %v1449, %v1513
    %v1515 = vpop.f32.mrf.mxu0
    %v1516 = vpop.f32.mrf.mxu0
    %v1517 = vadd.f32 %v1449, %v1516
    %v1518 = vpop.f32.mrf.mxu0
    %1519 = vdwg.mxu0
    %v1520 = vadd.f32 %v1311, %v1514
    %v1521 = vadd.f32 %v1312, %v1517
    %1522 = vst.msk [vmem:[#allocation10] sm:$0xff] %vm99, %v1520
    %1523 = vst.msk [vmem:[#allocation10 + $0x8] sm:$0xff] %vm99, %v1521
    // Predicated region
    $region70: #{tpu_custom_call.1} parent=1 // pred_check
      _
    $region71: #{tpu_custom_call.1} parent=1 // pred_check_branch
      %1525 = sbr.rel (0) target = $region73
    $region72: #{tpu_custom_call.1} parent=1 // pred_region
      %s1527 = ssub.s32 256, 256
      %1528 = vsyncadd [#allocation4], %s1527
      %s1529 = sshll.u32 [#allocation10], 4
      %s1530 = int_to_ptr.vmem [resolvable:$true] %s1529
      %1535 = dma.vmem_to_hbm [thread:$0]  %s1530, 256, %s13, [#allocation4], 128, 128, 8
    $region73: #{tpu_custom_call.1} parent=1 // pred_fallthru
      _
    // Predicated region
    $region74: #{tpu_custom_call.1} parent=1 // pred_check
      _
    $region75: #{tpu_custom_call.1} parent=1 // pred_check_branch
      %1537 = sbr.rel (0) target = $region77
    $region76: #{tpu_custom_call.1} parent=1 // pred_region
      %1538 = dma.done [#allocation4], 256
    $region77: #{tpu_custom_call.1} parent=1 // pred_fallthru
      _
    %1539 = vsyncpa [#allocation3], 1
    %1540 = vsyncpa [#allocation6], 1
    %1541 = vsyncpa [#allocation9], 1
    %1542 = vsyncpa [#allocation4], 1

</llo_original>
